<compile_context>
chip_gen: v6e
topology: v6e:2x2x1
jax: 0.10.0
libtpu: 0.0.40
codegen_flags: <defaults>
</compile_context>

<pallas_src>
import functools

import jax
import jax.numpy as jnp
import numpy as np
from jax import lax
from jax.experimental import pallas as pl
from jax.experimental.pallas import tpu as pltpu


def _edge_iou_kernel(logits_ref, tgt_ref, out_ref, *, edge_range):
    C, H, W = logits_ref.shape[1], logits_ref.shape[2], logits_ref.shape[3]
    r = edge_range
    eps = jnp.float32(1e-24)
    one = jnp.float32(1.0)
    zero = jnp.float32(0.0)

    x = logits_ref[0]          # (C, H, W) float32 logits
    tgt = tgt_ref[0]           # (H, W)   int32 class indices

    # ---- softmax over classes (axis 0): one divide on the (H, W) denominator ----
    m = jnp.max(x, axis=0)                          # (H, W)
    e = jnp.exp(x - m[None, :, :])                  # (C, H, W)  (EUP)
    s = jnp.sum(e, axis=0)                          # (H, W)
    inv_s = one / s                                 # single (H, W) reciprocal
    probs = e * inv_s[None, :, :]                   # (C, H, W)

    # ---- one-hot targets + argmax prediction (first-max tie-break, on logits) ----
    cls_iota = lax.broadcasted_iota(jnp.int32, (C, H, W), 0)
    t1h = (cls_iota == tgt[None, :, :]).astype(jnp.float32)                # (C, H, W)
    is_max = x == m[None, :, :]
    pred_idx = jnp.min(jnp.where(is_max, cls_iota, jnp.int32(C)), axis=0)  # (H, W)

    def class_sum(a):          # (C, H, W) -> (C,)
        return jnp.sum(jnp.sum(a, axis=2), axis=1)

    # ---- plain (soft) IoU term ----
    pt = probs * t1h                                 # reused by the edge term below
    inter = class_sum(pt)
    total = class_sum(probs) + class_sum(t1h)
    union = total - inter
    iou = one - (inter + eps) / (union + eps)                      # (C,)

    # ---- edge decision via separable windowed min/max of the index maps ----
    # For interior pixels the circular rolls never wrap; wrapped border pixels
    # are masked out by `in_range`, so the result there is irrelevant.
    def win_minmax(idx):       # (H, W) int32 -> (min, max) over (2r+1)^2 window
        mn = idx
        mx = idx
        for d in range(1, r + 1):               # horizontal (lane) pass; rolls shared
            fwd = pltpu.roll(idx, W - d, 1)     # idx[:, j + d]
            bwd = pltpu.roll(idx, d, 1)         # idx[:, j - d]
            mn = jnp.minimum(mn, jnp.minimum(fwd, bwd))
            mx = jnp.maximum(mx, jnp.maximum(fwd, bwd))
        mn2, mx2 = mn, mx
        for d in range(1, r + 1):               # vertical (sublane) pass
            mn2 = jnp.minimum(mn2, jnp.minimum(pltpu.roll(mn, H - d, 0),
                                               pltpu.roll(mn, d, 0)))
            mx2 = jnp.maximum(mx2, jnp.maximum(pltpu.roll(mx, H - d, 0),
                                               pltpu.roll(mx, d, 0)))
        return mn2, mx2

    row_i = lax.broadcasted_iota(jnp.int32, (H, W), 0)
    col_j = lax.broadcasted_iota(jnp.int32, (H, W), 1)
    in_range = ((row_i >= r) & (row_i < H - r) &
                (col_j >= r) & (col_j < W - r))

    t_mn, t_mx = win_minmax(tgt)
    p_mn, p_mx = win_minmax(pred_idx)
    # "not an edge" <=> uniform window AND window fully inside the image
    t_flag = jnp.where((t_mn == t_mx) & in_range, zero, one)       # (H, W)
    p_flag = jnp.where((p_mn == p_mx) & in_range, zero, one)       # (H, W)

    # predicted one-hot never materialized: p1h[c]*t1h[c] == t1h[c]*(pred==tgt)
    agree = (pred_idx == tgt).astype(jnp.float32)                  # (H, W)
    w_inter = (agree * p_flag * t_flag)[None, :, :]                # (1, H, W)
    inter2 = class_sum(pt * w_inter)
    union2 = class_sum(t1h * t_flag[None, :, :])
    eiou = one - (inter2 + eps) / (union2 + eps)                   # (C,)

    # Lane-dense output block: (2, C) — row 0 = IoU, row 1 = edge IoU.
    out_ref[0] = jnp.concatenate([iou.reshape(1, C), eiou.reshape(1, C)], axis=0)


def edge_iou_loss(logits, targets, *, n_class, edge_range=3, lamda=1.0, weight=None):
    B, C, H, W = logits.shape
    assert C == n_class
    kern = functools.partial(_edge_iou_kernel, edge_range=edge_range)
    # TODO(synk): for very large H*W on v7x (64 MiB VMEM), add a second grid
    # axis over H tiles with an edge_range-row halo for the windowed min/max.
    terms = pl.pallas_call(
        kern,
        out_shape=jax.ShapeDtypeStruct((B, 2, C), jnp.float32),
        grid_spec=pltpu.PrefetchScalarGridSpec(
            num_scalar_prefetch=0,
            grid=(B,),
            in_specs=[pl.BlockSpec((1, C, H, W), lambda b: (b, 0, 0, 0)),
                      pl.BlockSpec((1, H, W), lambda b: (b, 0, 0))],
            out_specs=pl.BlockSpec((1, 2, C), lambda b: (b, 0, 0)),
        ),
        compiler_params=pltpu.CompilerParams(
            dimension_semantics=("parallel",),      # megacore over batch
            vmem_limit_bytes=64 * 1024 * 1024,      # above 16/32 MiB scoped defaults
        ),
    )(logits.astype(jnp.float32), targets.astype(jnp.int32))

    iou = terms[:, 0, :]       # (B, C)
    eiou = terms[:, 1, :]      # (B, C)
    if weight is None:
        weight = jnp.ones((n_class,), jnp.float32)  # module default weights
    iou = weight[None, :] * iou
    eiou = weight[None, :] * eiou
    return iou.mean() + eiou.mean() * lamda


def _reference(logits, targets, *, n_class, edge_range=3, lamda=1.0, weight=None):
    """Pure-JAX reference mirroring the PyTorch module."""
    probs = jax.nn.softmax(logits, axis=1)
    t1h = jax.nn.one_hot(targets, n_class, axis=1, dtype=jnp.float32)
    inter = (probs * t1h).sum(axis=(2, 3))
    total = (probs + t1h).sum(axis=(2, 3))
    union = total - inter
    iou = 1.0 - (inter + 1e-24) / (union + 1e-24)
    if weight is None:
        weight = jnp.ones((n_class,), jnp.float32)
    iou = weight[None, :] * iou

    pred = jnp.argmax(probs, axis=1)
    p1h = jax.nn.one_hot(pred, n_class, axis=1, dtype=jnp.float32)
    k = 2 * edge_range + 1

    def avg_pool(x):
        s = lax.reduce_window(x, 0.0, lax.add, (1, 1, k, k), (1, 1, 1, 1),
                              [(0, 0), (0, 0),
                               (edge_range, edge_range), (edge_range, edge_range)])
        return s / float(k * k)

    def edge(seg):
        return seg * (avg_pool(seg) != seg).astype(jnp.float32)

    out_e = probs * edge(p1h)
    tgt_e = t1h * edge(t1h)
    inter2 = (out_e * tgt_e).sum(axis=(2, 3))
    union2 = tgt_e.sum(axis=(2, 3))
    eiou = 1.0 - (inter2 + 1e-24) / (union2 + 1e-24)
    eiou = weight[None, :] * eiou
    return iou.mean() + eiou.mean() * lamda


if __name__ == "__main__":
    B, C, H, W = 2, 4, 16, 16
    key = jax.random.PRNGKey(0)
    k1, k2 = jax.random.split(key)
    logits = jax.random.normal(k1, (B, C, H, W), jnp.float32)
    targets = jax.random.randint(k2, (B, H, W), 0, C, jnp.int32)

    loss = edge_iou_loss(logits, targets, n_class=C, edge_range=3, lamda=1.0)
    loss = jax.block_until_ready(loss)

    ref = _reference(logits, targets, n_class=C, edge_range=3, lamda=1.0)
    np.testing.assert_allclose(np.asarray(loss), np.asarray(ref), rtol=1e-5, atol=1e-5)

    print("KERNEL_OK")
</pallas_src>

<mosaic_0001>
module attributes {stable_mosaic.version = 11 : i64} {
  func.func @_edge_iou_kernel(%arg0: i32, %arg1: memref<1x4x16x16xf32, #tpu.memory_space<vmem>>, %arg2: memref<1x16x16xi32, #tpu.memory_space<vmem>>, %arg3: memref<1x2x4xf32, #tpu.memory_space<vmem>>) attributes {dimension_semantics = [#tpu.dimension_semantics<parallel>], iteration_bounds = array<i64: 2>, scalar_prefetch = 0 : i64, scratch_operands = 0 : i64, tpu.core_type = #tpu.core_type<tc>, window_params = [{transform_indices = @transform_0, window_bounds = array<i64: 1, 4, 16, 16>}, {transform_indices = @transform_1, window_bounds = array<i64: 1, 16, 16>}, {transform_indices = @transform_2, window_bounds = array<i64: 1, 2, 4>}]} {
    %c0 = arith.constant 0 : index
    %c0_0 = arith.constant 0 : index
    %c0_1 = arith.constant 0 : index
    %c0_2 = arith.constant 0 : index
    %0 = vector.load %arg1[%c0, %c0_0, %c0_1, %c0_2] : memref<1x4x16x16xf32, #tpu.memory_space<vmem>>, vector<1x4x16x16xf32>
    %1 = vector.shape_cast %0 : vector<1x4x16x16xf32> to vector<4x16x16xf32>
    %c0_3 = arith.constant 0 : index
    %c0_4 = arith.constant 0 : index
    %c0_5 = arith.constant 0 : index
    %2 = vector.load %arg2[%c0_3, %c0_4, %c0_5] : memref<1x16x16xi32, #tpu.memory_space<vmem>>, vector<1x16x16xi32>
    %3 = vector.shape_cast %2 : vector<1x16x16xi32> to vector<16x16xi32>
    %cst = arith.constant dense<0xFF800000> : vector<16x16xf32>
    %4 = vector.multi_reduction <maximumf>, %1, %cst [0] : vector<4x16x16xf32> to vector<16x16xf32>
    %5 = vector.shape_cast %4 : vector<16x16xf32> to vector<1x16x16xf32>
    %6 = vector.broadcast %5 : vector<1x16x16xf32> to vector<4x16x16xf32>
    %7 = arith.subf %1, %6 : vector<4x16x16xf32>
    %8 = math.exp %7 : vector<4x16x16xf32>
    %cst_6 = arith.constant dense<0.000000e+00> : vector<16x16xf32>
    %9 = vector.multi_reduction <add>, %8, %cst_6 [0] : vector<4x16x16xf32> to vector<16x16xf32>
    %cst_7 = arith.constant 1.000000e+00 : f32
    %10 = vector.broadcast %cst_7 : f32 to vector<16x16xf32>
    %11 = arith.divf %10, %9 : vector<16x16xf32>
    %12 = vector.shape_cast %11 : vector<16x16xf32> to vector<1x16x16xf32>
    %13 = vector.broadcast %12 : vector<1x16x16xf32> to vector<4x16x16xf32>
    %14 = arith.mulf %8, %13 : vector<4x16x16xf32>
    %15 = tpu.iota {dimensions = array<i32: 0>} : vector<4x16x16xi32>
    %16 = vector.shape_cast %3 : vector<16x16xi32> to vector<1x16x16xi32>
    %17 = vector.broadcast %16 : vector<1x16x16xi32> to vector<4x16x16xi32>
    %18 = arith.cmpi eq, %15, %17 : vector<4x16x16xi32>
    %19 = arith.extui %18 : vector<4x16x16xi1> to vector<4x16x16xi32>
    %20 = arith.sitofp %19 : vector<4x16x16xi32> to vector<4x16x16xf32>
    %21 = vector.shape_cast %4 : vector<16x16xf32> to vector<1x16x16xf32>
    %22 = vector.broadcast %21 : vector<1x16x16xf32> to vector<4x16x16xf32>
    %23 = arith.cmpf oeq, %1, %22 : vector<4x16x16xf32>
    %c4_i32 = arith.constant 4 : i32
    %24 = vector.broadcast %c4_i32 : i32 to vector<4x16x16xi32>
    %25 = arith.select %23, %15, %24 : vector<4x16x16xi1>, vector<4x16x16xi32>
    %cst_8 = arith.constant dense<2147483647> : vector<16x16xi32>
    %26 = vector.multi_reduction <minsi>, %25, %cst_8 [0] : vector<4x16x16xi32> to vector<16x16xi32>
    %27 = arith.mulf %14, %20 : vector<4x16x16xf32>
    %cst_9 = arith.constant dense<0.000000e+00> : vector<4x16xf32>
    %28 = vector.multi_reduction <add>, %27, %cst_9 [2] : vector<4x16x16xf32> to vector<4x16xf32>
    %cst_10 = arith.constant dense<0.000000e+00> : vector<4xf32>
    %29 = vector.multi_reduction <add>, %28, %cst_10 [1] : vector<4x16xf32> to vector<4xf32>
    %cst_11 = arith.constant dense<0.000000e+00> : vector<4x16xf32>
    %30 = vector.multi_reduction <add>, %14, %cst_11 [2] : vector<4x16x16xf32> to vector<4x16xf32>
    %cst_12 = arith.constant dense<0.000000e+00> : vector<4xf32>
    %31 = vector.multi_reduction <add>, %30, %cst_12 [1] : vector<4x16xf32> to vector<4xf32>
    %cst_13 = arith.constant dense<0.000000e+00> : vector<4x16xf32>
    %32 = vector.multi_reduction <add>, %20, %cst_13 [2] : vector<4x16x16xf32> to vector<4x16xf32>
    %cst_14 = arith.constant dense<0.000000e+00> : vector<4xf32>
    %33 = vector.multi_reduction <add>, %32, %cst_14 [1] : vector<4x16xf32> to vector<4xf32>
    %34 = arith.addf %31, %33 : vector<4xf32>
    %35 = arith.subf %34, %29 : vector<4xf32>
    %cst_15 = arith.constant 1.000000e-24 : f32
    %36 = vector.broadcast %cst_15 : f32 to vector<4xf32>
    %37 = arith.addf %29, %36 : vector<4xf32>
    %cst_16 = arith.constant 1.000000e-24 : f32
    %38 = vector.broadcast %cst_16 : f32 to vector<4xf32>
    %39 = arith.addf %35, %38 : vector<4xf32>
    %40 = arith.divf %37, %39 : vector<4xf32>
    %cst_17 = arith.constant 1.000000e+00 : f32
    %41 = vector.broadcast %cst_17 : f32 to vector<4xf32>
    %42 = arith.subf %41, %40 : vector<4xf32>
    %43 = tpu.iota {dimensions = array<i32: 0>} : vector<16x16xi32>
    %44 = tpu.iota {dimensions = array<i32: 1>} : vector<16x16xi32>
    %c3_i32 = arith.constant 3 : i32
    %45 = vector.broadcast %c3_i32 : i32 to vector<16x16xi32>
    %46 = arith.cmpi sge, %43, %45 : vector<16x16xi32>
    %c13_i32 = arith.constant 13 : i32
    %47 = vector.broadcast %c13_i32 : i32 to vector<16x16xi32>
    %48 = arith.cmpi slt, %43, %47 : vector<16x16xi32>
    %49 = arith.andi %46, %48 : vector<16x16xi1>
    %c3_i32_18 = arith.constant 3 : i32
    %50 = vector.broadcast %c3_i32_18 : i32 to vector<16x16xi32>
    %51 = arith.cmpi sge, %44, %50 : vector<16x16xi32>
    %52 = arith.andi %49, %51 : vector<16x16xi1>
    %c13_i32_19 = arith.constant 13 : i32
    %53 = vector.broadcast %c13_i32_19 : i32 to vector<16x16xi32>
    %54 = arith.cmpi slt, %44, %53 : vector<16x16xi32>
    %55 = arith.andi %52, %54 : vector<16x16xi1>
    %c15_i32 = arith.constant 15 : i32
    %56 = tpu.dynamic_rotate %3 by %c15_i32 dim 1 : vector<16x16xi32>, i32 -> vector<16x16xi32>
    %c1_i32 = arith.constant 1 : i32
    %57 = tpu.dynamic_rotate %3 by %c1_i32 dim 1 : vector<16x16xi32>, i32 -> vector<16x16xi32>
    %58 = arith.minsi %56, %57 : vector<16x16xi32>
    %59 = arith.minsi %3, %58 : vector<16x16xi32>
    %60 = arith.maxsi %56, %57 : vector<16x16xi32>
    %61 = arith.maxsi %3, %60 : vector<16x16xi32>
    %c14_i32 = arith.constant 14 : i32
    %62 = tpu.dynamic_rotate %3 by %c14_i32 dim 1 : vector<16x16xi32>, i32 -> vector<16x16xi32>
    %c2_i32 = arith.constant 2 : i32
    %63 = tpu.dynamic_rotate %3 by %c2_i32 dim 1 : vector<16x16xi32>, i32 -> vector<16x16xi32>
    %64 = arith.minsi %62, %63 : vector<16x16xi32>
    %65 = arith.minsi %59, %64 : vector<16x16xi32>
    %66 = arith.maxsi %62, %63 : vector<16x16xi32>
    %67 = arith.maxsi %61, %66 : vector<16x16xi32>
    %c13_i32_20 = arith.constant 13 : i32
    %68 = tpu.dynamic_rotate %3 by %c13_i32_20 dim 1 : vector<16x16xi32>, i32 -> vector<16x16xi32>
    %c3_i32_21 = arith.constant 3 : i32
    %69 = tpu.dynamic_rotate %3 by %c3_i32_21 dim 1 : vector<16x16xi32>, i32 -> vector<16x16xi32>
    %70 = arith.minsi %68, %69 : vector<16x16xi32>
    %71 = arith.minsi %65, %70 : vector<16x16xi32>
    %72 = arith.maxsi %68, %69 : vector<16x16xi32>
    %73 = arith.maxsi %67, %72 : vector<16x16xi32>
    %c15_i32_22 = arith.constant 15 : i32
    %74 = tpu.dynamic_rotate %71 by %c15_i32_22 dim 0 : vector<16x16xi32>, i32 -> vector<16x16xi32>
    %c1_i32_23 = arith.constant 1 : i32
    %75 = tpu.dynamic_rotate %71 by %c1_i32_23 dim 0 : vector<16x16xi32>, i32 -> vector<16x16xi32>
    %76 = arith.minsi %74, %75 : vector<16x16xi32>
    %77 = arith.minsi %71, %76 : vector<16x16xi32>
    %c15_i32_24 = arith.constant 15 : i32
    %78 = tpu.dynamic_rotate %73 by %c15_i32_24 dim 0 : vector<16x16xi32>, i32 -> vector<16x16xi32>
    %c1_i32_25 = arith.constant 1 : i32
    %79 = tpu.dynamic_rotate %73 by %c1_i32_25 dim 0 : vector<16x16xi32>, i32 -> vector<16x16xi32>
    %80 = arith.maxsi %78, %79 : vector<16x16xi32>
    %81 = arith.maxsi %73, %80 : vector<16x16xi32>
    %c14_i32_26 = arith.constant 14 : i32
    %82 = tpu.dynamic_rotate %71 by %c14_i32_26 dim 0 : vector<16x16xi32>, i32 -> vector<16x16xi32>
    %c2_i32_27 = arith.constant 2 : i32
    %83 = tpu.dynamic_rotate %71 by %c2_i32_27 dim 0 : vector<16x16xi32>, i32 -> vector<16x16xi32>
    %84 = arith.minsi %82, %83 : vector<16x16xi32>
    %85 = arith.minsi %77, %84 : vector<16x16xi32>
    %c14_i32_28 = arith.constant 14 : i32
    %86 = tpu.dynamic_rotate %73 by %c14_i32_28 dim 0 : vector<16x16xi32>, i32 -> vector<16x16xi32>
    %c2_i32_29 = arith.constant 2 : i32
    %87 = tpu.dynamic_rotate %73 by %c2_i32_29 dim 0 : vector<16x16xi32>, i32 -> vector<16x16xi32>
    %88 = arith.maxsi %86, %87 : vector<16x16xi32>
    %89 = arith.maxsi %81, %88 : vector<16x16xi32>
    %c13_i32_30 = arith.constant 13 : i32
    %90 = tpu.dynamic_rotate %71 by %c13_i32_30 dim 0 : vector<16x16xi32>, i32 -> vector<16x16xi32>
    %c3_i32_31 = arith.constant 3 : i32
    %91 = tpu.dynamic_rotate %71 by %c3_i32_31 dim 0 : vector<16x16xi32>, i32 -> vector<16x16xi32>
    %92 = arith.minsi %90, %91 : vector<16x16xi32>
    %93 = arith.minsi %85, %92 : vector<16x16xi32>
    %c13_i32_32 = arith.constant 13 : i32
    %94 = tpu.dynamic_rotate %73 by %c13_i32_32 dim 0 : vector<16x16xi32>, i32 -> vector<16x16xi32>
    %c3_i32_33 = arith.constant 3 : i32
    %95 = tpu.dynamic_rotate %73 by %c3_i32_33 dim 0 : vector<16x16xi32>, i32 -> vector<16x16xi32>
    %96 = arith.maxsi %94, %95 : vector<16x16xi32>
    %97 = arith.maxsi %89, %96 : vector<16x16xi32>
    %c15_i32_34 = arith.constant 15 : i32
    %98 = tpu.dynamic_rotate %26 by %c15_i32_34 dim 1 : vector<16x16xi32>, i32 -> vector<16x16xi32>
    %c1_i32_35 = arith.constant 1 : i32
    %99 = tpu.dynamic_rotate %26 by %c1_i32_35 dim 1 : vector<16x16xi32>, i32 -> vector<16x16xi32>
    %100 = arith.minsi %98, %99 : vector<16x16xi32>
    %101 = arith.minsi %26, %100 : vector<16x16xi32>
    %102 = arith.maxsi %98, %99 : vector<16x16xi32>
    %103 = arith.maxsi %26, %102 : vector<16x16xi32>
    %c14_i32_36 = arith.constant 14 : i32
    %104 = tpu.dynamic_rotate %26 by %c14_i32_36 dim 1 : vector<16x16xi32>, i32 -> vector<16x16xi32>
    %c2_i32_37 = arith.constant 2 : i32
    %105 = tpu.dynamic_rotate %26 by %c2_i32_37 dim 1 : vector<16x16xi32>, i32 -> vector<16x16xi32>
    %106 = arith.minsi %104, %105 : vector<16x16xi32>
    %107 = arith.minsi %101, %106 : vector<16x16xi32>
    %108 = arith.maxsi %104, %105 : vector<16x16xi32>
    %109 = arith.maxsi %103, %108 : vector<16x16xi32>
    %c13_i32_38 = arith.constant 13 : i32
    %110 = tpu.dynamic_rotate %26 by %c13_i32_38 dim 1 : vector<16x16xi32>, i32 -> vector<16x16xi32>
    %c3_i32_39 = arith.constant 3 : i32
    %111 = tpu.dynamic_rotate %26 by %c3_i32_39 dim 1 : vector<16x16xi32>, i32 -> vector<16x16xi32>
    %112 = arith.minsi %110, %111 : vector<16x16xi32>
    %113 = arith.minsi %107, %112 : vector<16x16xi32>
    %114 = arith.maxsi %110, %111 : vector<16x16xi32>
    %115 = arith.maxsi %109, %114 : vector<16x16xi32>
    %c15_i32_40 = arith.constant 15 : i32
    %116 = tpu.dynamic_rotate %113 by %c15_i32_40 dim 0 : vector<16x16xi32>, i32 -> vector<16x16xi32>
    %c1_i32_41 = arith.constant 1 : i32
    %117 = tpu.dynamic_rotate %113 by %c1_i32_41 dim 0 : vector<16x16xi32>, i32 -> vector<16x16xi32>
    %118 = arith.minsi %116, %117 : vector<16x16xi32>
    %119 = arith.minsi %113, %118 : vector<16x16xi32>
    %c15_i32_42 = arith.constant 15 : i32
    %120 = tpu.dynamic_rotate %115 by %c15_i32_42 dim 0 : vector<16x16xi32>, i32 -> vector<16x16xi32>
    %c1_i32_43 = arith.constant 1 : i32
    %121 = tpu.dynamic_rotate %115 by %c1_i32_43 dim 0 : vector<16x16xi32>, i32 -> vector<16x16xi32>
    %122 = arith.maxsi %120, %121 : vector<16x16xi32>
    %123 = arith.maxsi %115, %122 : vector<16x16xi32>
    %c14_i32_44 = arith.constant 14 : i32
    %124 = tpu.dynamic_rotate %113 by %c14_i32_44 dim 0 : vector<16x16xi32>, i32 -> vector<16x16xi32>
    %c2_i32_45 = arith.constant 2 : i32
    %125 = tpu.dynamic_rotate %113 by %c2_i32_45 dim 0 : vector<16x16xi32>, i32 -> vector<16x16xi32>
    %126 = arith.minsi %124, %125 : vector<16x16xi32>
    %127 = arith.minsi %119, %126 : vector<16x16xi32>
    %c14_i32_46 = arith.constant 14 : i32
    %128 = tpu.dynamic_rotate %115 by %c14_i32_46 dim 0 : vector<16x16xi32>, i32 -> vector<16x16xi32>
    %c2_i32_47 = arith.constant 2 : i32
    %129 = tpu.dynamic_rotate %115 by %c2_i32_47 dim 0 : vector<16x16xi32>, i32 -> vector<16x16xi32>
    %130 = arith.maxsi %128, %129 : vector<16x16xi32>
    %131 = arith.maxsi %123, %130 : vector<16x16xi32>
    %c13_i32_48 = arith.constant 13 : i32
    %132 = tpu.dynamic_rotate %113 by %c13_i32_48 dim 0 : vector<16x16xi32>, i32 -> vector<16x16xi32>
    %c3_i32_49 = arith.constant 3 : i32
    %133 = tpu.dynamic_rotate %113 by %c3_i32_49 dim 0 : vector<16x16xi32>, i32 -> vector<16x16xi32>
    %134 = arith.minsi %132, %133 : vector<16x16xi32>
    %135 = arith.minsi %127, %134 : vector<16x16xi32>
    %c13_i32_50 = arith.constant 13 : i32
    %136 = tpu.dynamic_rotate %115 by %c13_i32_50 dim 0 : vector<16x16xi32>, i32 -> vector<16x16xi32>
    %c3_i32_51 = arith.constant 3 : i32
    %137 = tpu.dynamic_rotate %115 by %c3_i32_51 dim 0 : vector<16x16xi32>, i32 -> vector<16x16xi32>
    %138 = arith.maxsi %136, %137 : vector<16x16xi32>
    %139 = arith.maxsi %131, %138 : vector<16x16xi32>
    %140 = arith.cmpi eq, %93, %97 : vector<16x16xi32>
    %141 = arith.andi %140, %55 : vector<16x16xi1>
    %cst_52 = arith.constant 0.000000e+00 : f32
    %cst_53 = arith.constant 1.000000e+00 : f32
    %142 = vector.broadcast %cst_52 : f32 to vector<16x16xf32>
    %143 = vector.broadcast %cst_53 : f32 to vector<16x16xf32>
    %144 = arith.select %141, %142, %143 : vector<16x16xi1>, vector<16x16xf32>
    %145 = arith.cmpi eq, %135, %139 : vector<16x16xi32>
    %146 = arith.andi %145, %55 : vector<16x16xi1>
    %cst_54 = arith.constant 0.000000e+00 : f32
    %cst_55 = arith.constant 1.000000e+00 : f32
    %147 = vector.broadcast %cst_54 : f32 to vector<16x16xf32>
    %148 = vector.broadcast %cst_55 : f32 to vector<16x16xf32>
    %149 = arith.select %146, %147, %148 : vector<16x16xi1>, vector<16x16xf32>
    %150 = arith.cmpi eq, %26, %3 : vector<16x16xi32>
    %151 = arith.extui %150 : vector<16x16xi1> to vector<16x16xi32>
    %152 = arith.sitofp %151 : vector<16x16xi32> to vector<16x16xf32>
    %153 = arith.mulf %152, %149 : vector<16x16xf32>
    %154 = arith.mulf %153, %144 : vector<16x16xf32>
    %155 = vector.shape_cast %154 : vector<16x16xf32> to vector<1x16x16xf32>
    %156 = vector.broadcast %155 : vector<1x16x16xf32> to vector<4x16x16xf32>
    %157 = arith.mulf %27, %156 : vector<4x16x16xf32>
    %cst_56 = arith.constant dense<0.000000e+00> : vector<4x16xf32>
    %158 = vector.multi_reduction <add>, %157, %cst_56 [2] : vector<4x16x16xf32> to vector<4x16xf32>
    %cst_57 = arith.constant dense<0.000000e+00> : vector<4xf32>
    %159 = vector.multi_reduction <add>, %158, %cst_57 [1] : vector<4x16xf32> to vector<4xf32>
    %160 = vector.shape_cast %144 : vector<16x16xf32> to vector<1x16x16xf32>
    %161 = vector.broadcast %160 : vector<1x16x16xf32> to vector<4x16x16xf32>
    %162 = arith.mulf %20, %161 : vector<4x16x16xf32>
    %cst_58 = arith.constant dense<0.000000e+00> : vector<4x16xf32>
    %163 = vector.multi_reduction <add>, %162, %cst_58 [2] : vector<4x16x16xf32> to vector<4x16xf32>
    %cst_59 = arith.constant dense<0.000000e+00> : vector<4xf32>
    %164 = vector.multi_reduction <add>, %163, %cst_59 [1] : vector<4x16xf32> to vector<4xf32>
    %cst_60 = arith.constant 1.000000e-24 : f32
    %165 = vector.broadcast %cst_60 : f32 to vector<4xf32>
    %166 = arith.addf %159, %165 : vector<4xf32>
    %cst_61 = arith.constant 1.000000e-24 : f32
    %167 = vector.broadcast %cst_61 : f32 to vector<4xf32>
    %168 = arith.addf %164, %167 : vector<4xf32>
    %169 = arith.divf %166, %168 : vector<4xf32>
    %cst_62 = arith.constant 1.000000e+00 : f32
    %170 = vector.broadcast %cst_62 : f32 to vector<4xf32>
    %171 = arith.subf %170, %169 : vector<4xf32>
    %172 = vector.shape_cast %42 : vector<4xf32> to vector<1x4xf32>
    %173 = vector.shape_cast %171 : vector<4xf32> to vector<1x4xf32>
    %174 = tpu.concatenate %172, %173 in 0 : vector<1x4xf32>, vector<1x4xf32> -> vector<2x4xf32>
    %c0_63 = arith.constant 0 : index
    %c0_64 = arith.constant 0 : index
    %c0_65 = arith.constant 0 : index
    %175 = vector.load %arg3[%c0_63, %c0_64, %c0_65] : memref<1x2x4xf32, #tpu.memory_space<vmem>>, vector<1x2x4xf32>
    %176 = vector.shape_cast %175 : vector<1x2x4xf32> to vector<2x4xf32>
    %177 = vector.shape_cast %174 : vector<2x4xf32> to vector<1x2x4xf32>
    tpu.vector_store %arg3[%c0_63, %c0_64, %c0_65], %177 {strides = array<i32>} : memref<1x2x4xf32, #tpu.memory_space<vmem>>, vector<1x2x4xf32>,
    return
  }
  func.func @transform_0(%arg0: i32) -> (i32, i32, i32, i32) {
    %c0_i32 = arith.constant 0 : i32
    %c0_i32_0 = arith.constant 0 : i32
    %c0_i32_1 = arith.constant 0 : i32
    %c0_i32_2 = arith.constant 0 : i32
    return %arg0, %c0_i32, %c0_i32_0, %c0_i32_1 : i32, i32, i32, i32
  }
  func.func @transform_1(%arg0: i32) -> (i32, i32, i32) {
    %c0_i32 = arith.constant 0 : i32
    %c0_i32_0 = arith.constant 0 : i32
    %c0_i32_1 = arith.constant 0 : i32
    return %arg0, %c0_i32, %c0_i32_0 : i32, i32, i32
  }
  func.func @transform_2(%arg0: i32) -> (i32, i32, i32) {
    %c0_i32 = arith.constant 0 : i32
    %c0_i32_0 = arith.constant 0 : i32
    %c0_i32_1 = arith.constant 0 : i32
    return %arg0, %c0_i32, %c0_i32_0 : i32, i32, i32
  }
}

</mosaic_0001>

<llo_original>
// kernel: tpu_custom_call.1
$region0: #{tpu_custom_call.1}
  #allocation0 [shape = 'u32[]', space=smem, size = 0x4, offset = 0x4, fixed_abs, tag = 'smem constant byte address 0x4 - core index']
  #allocation1 [shape = 'u32[144,128]{1,0:T(1,128)}', space=vmem, size = 0x12000, scoped, tag = 'internal scratch']
  %s0 = inlined_call_operand.hbm [shape: f32[2,4,16,16], index: 0, kind: input, shape index: {}]
  %s1 = inlined_call_operand.hbm [shape: s32[2,16,16], index: 1, kind: input, shape index: {}]
  %s2 = inlined_call_operand.hbm [shape: f32[2,2,4], index: 2, kind: output, shape index: {}]
  %s3 = sld [smem:[#allocation0]]
  $region49: #{tpu_custom_call.1} parent=0
    _
  %s5 = ssub.s32 1, %s3
  %s6 = scalar_select 0, %s5, %s3
  $region1: #{tpu_custom_call.1} parent=0
    #allocation2 [shape = 'u8[65536]{0}', space=vmem, size = 0x10000, scoped, tag = 'input window, operand 0']
    #allocation3 [shape = 's32[2]{0}', space=sflag, size = 0x8, scoped, tag = 'scoped memory for tpu_custom_call.1']
    #allocation4 [shape = 's32[2]{0}', space=sflag, size = 0x8, scoped, tag = 'scoped memory for tpu_custom_call.1']
    #allocation5 [shape = 'u8[16384]{0}', space=vmem, size = 0x4000, scoped, tag = 'input window, operand 1']
    #allocation6 [shape = 's32[2]{0}', space=sflag, size = 0x8, scoped, tag = 'scoped memory for tpu_custom_call.1']
    #allocation7 [shape = 'u8[2048]{0}', space=vmem, size = 0x800, scoped, tag = 'output window, operand 0']
    %7 = vsyncpa [#allocation3], 0
    %s8 = scalar_lea.sflag [#allocation3], 1
    %9 = vsyncpa %s8, 0
    %10 = vsyncpa [#allocation6], 0
    %s11 = scalar_lea.sflag [#allocation6], 1
    %12 = vsyncpa %s11, 0
    %13 = vsyncpa [#allocation4], 0
    %s14 = scalar_lea.sflag [#allocation4], 1
    %15 = vsyncpa %s14, 0
    loop: start=0, step=1, limit=4
    $region2: #{tpu_custom_call.1} parent=1 // loop_pre_header
      _
    $region3: #{tpu_custom_call.1} parent=1 // loop_header
      %s17 = sphi 0, %s21
      %p18 = scmp.ge.s32.totalorder %s17, 4
      %s27 = sphi 0, %s29
      %s30 = sphi 0, %s27
      %s31 = sphi 0, %s30
      %s47 = sphi 0, %s31
      %s53 = sphi 0, %s55
      %s56 = sphi 0, %s53
      %s57 = sphi 0, %s56
      %s73 = sphi 0, %s57
      %s79 = sphi 0, %s81
      %s82 = sphi 0, %s79
      %s83 = sphi 0, %s82
      %s99 = sphi 0, %s83
    $region4: #{tpu_custom_call.1} parent=1 // loop_header_branch
      %20 = sbr.rel (%p18) target = $region8
    $region5: #{tpu_custom_call.1} parent=1 // loop_body
      %s22 = ssub.s32 %s17, 1
      %s23 = ssub.s32 %s17, 2
      %s24 = sadd.s32 %s17, 1
      %s25 = ssub.s32 %s17, %s24
      %p26 = scmp.eq.s32.totalorder %s25, 0
      %s28 = sadd.s32 %s27, 1
      %s29 = scalar_select %p26, %s27, %s28
      %p32 = pneg %p26
      %p33 = scmp.eq.s32.totalorder %s17, 1
      %p34 = por %p32, %p33
      %p35 = scmp.ne.s32.totalorder %s27, %s30
      %p36 = scmp.eq.s32.totalorder %s17, 0
      %p37 = por %p35, %p36
      %p38 = scmp.ne.s32.totalorder %s27, %s30
      %p39 = scmp.eq.s32.totalorder %s22, 1
      %p40 = por %p38, %p39
      %p41 = scmp.ne.s32.totalorder %s30, %s31
      %p42 = scmp.eq.s32.totalorder %s22, 0
      %p43 = por %p41, %p42
      %p44 = scmp.ne.s32.totalorder %s30, %s31
      %p45 = scmp.eq.s32.totalorder %s23, 1
      %p46 = por %p44, %p45
      %p48 = scmp.ne.s32.totalorder %s31, %s47
      %p49 = scmp.eq.s32.totalorder %s23, 0
      %p50 = por %p48, %p49
      %s51 = ssub.s32 %s17, %s24
      %p52 = scmp.eq.s32.totalorder %s51, 0
      %s54 = sadd.s32 %s53, 1
      %s55 = scalar_select %p52, %s53, %s54
      %p58 = pneg %p52
      %p59 = scmp.eq.s32.totalorder %s17, 1
      %p60 = por %p58, %p59
      %p61 = scmp.ne.s32.totalorder %s53, %s56
      %p62 = scmp.eq.s32.totalorder %s17, 0
      %p63 = por %p61, %p62
      %p64 = scmp.ne.s32.totalorder %s53, %s56
      %p65 = scmp.eq.s32.totalorder %s22, 1
      %p66 = por %p64, %p65
      %p67 = scmp.ne.s32.totalorder %s56, %s57
      %p68 = scmp.eq.s32.totalorder %s22, 0
      %p69 = por %p67, %p68
      %p70 = scmp.ne.s32.totalorder %s56, %s57
      %p71 = scmp.eq.s32.totalorder %s23, 1
      %p72 = por %p70, %p71
      %p74 = scmp.ne.s32.totalorder %s57, %s73
      %p75 = scmp.eq.s32.totalorder %s23, 0
      %p76 = por %p74, %p75
      %s77 = ssub.s32 %s17, %s24
      %p78 = scmp.eq.s32.totalorder %s77, 0
      %s80 = sadd.s32 %s79, 1
      %s81 = scalar_select %p78, %s79, %s80
      %p84 = pneg %p78
      %p85 = scmp.eq.s32.totalorder %s17, 1
      %p86 = por %p84, %p85
      %p87 = scmp.ne.s32.totalorder %s79, %s82
      %p88 = scmp.eq.s32.totalorder %s17, 0
      %p89 = por %p87, %p88
      %p90 = scmp.ne.s32.totalorder %s79, %s82
      %p91 = scmp.eq.s32.totalorder %s22, 1
      %p92 = por %p90, %p91
      %p93 = scmp.ne.s32.totalorder %s82, %s83
      %p94 = scmp.eq.s32.totalorder %s22, 0
      %p95 = por %p93, %p94
      %p96 = scmp.ne.s32.totalorder %s82, %s83
      %p97 = scmp.eq.s32.totalorder %s23, 1
      %p98 = por %p96, %p97
      %p100 = scmp.ne.s32.totalorder %s83, %s99
      %p101 = scmp.eq.s32.totalorder %s23, 0
      %p102 = por %p100, %p101
      %p103 = scmp.le.s32.totalorder 1, %s17
      %p104 = scmp.lt.s32.totalorder %s17, 3
      %p105 = pnand %p103, %p104
      %p106 = pneg %p105
      // Predicated region
      $region9: #{tpu_custom_call.1} parent=5 // pred_check
        _
      $region10: #{tpu_custom_call.1} parent=5 // pred_check_branch
        %108 = sbr.rel (%p105) target = $region12
      $region11: #{tpu_custom_call.1} parent=5 // pred_region
        %s109 = ssub.s32 %s17, 1
      $region12: #{tpu_custom_call.1} parent=5 // pred_fallthru
        _
      %p110 = scmp.lt.s32.totalorder %s17, 2
      // Predicated region
      $region13: #{tpu_custom_call.1} parent=5 // pred_check
        %p111 = pneg %p110
      $region14: #{tpu_custom_call.1} parent=5 // pred_check_branch
        %113 = sbr.rel (%p111) target = $region16
      $region15: #{tpu_custom_call.1} parent=5 // pred_region
        // Predicated region
        $region17: #{tpu_custom_call.1} parent=15 // pred_check
          %p114 = pneg %p37
        $region18: #{tpu_custom_call.1} parent=15 // pred_check_branch
          %116 = sbr.rel (%p114) target = $region20
        $region19: #{tpu_custom_call.1} parent=15 // pred_region
          %s117 = sand.u32 %s27, 1
          %s118 = scalar_lea.sflag [#allocation3], %s117
          %s119 = sand.u32 %s27, 1
          %s120 = smul.addr %s119, 64
          %s121 = scalar_lea.vmem [#allocation2], %s120
          %s123 = ssub.s32 1024, 1024
          %124 = vsyncadd %s118, %s123
          %s125 = smul.addr %s17, 8
          %s126 = smul.addr %s125, 128
          %s127 = scalar_lea.hbm %s0, %s126
          %s128 = sshll.u32 %s121, 4
          %s129 = int_to_ptr.vmem [resolvable:$true] %s128
          %134 = dma.hbm_to_vmem [thread:$0]  %s127, 1024, %s129, %s118, 128, 128, 8
        $region20: #{tpu_custom_call.1} parent=15 // pred_fallthru
          _
        // Predicated region
        $region21: #{tpu_custom_call.1} parent=15 // pred_check
          %p135 = pneg %p63
        $region22: #{tpu_custom_call.1} parent=15 // pred_check_branch
          %137 = sbr.rel (%p135) target = $region24
        $region23: #{tpu_custom_call.1} parent=15 // pred_region
          %s138 = sand.u32 %s53, 1
          %s139 = scalar_lea.sflag [#allocation6], %s138
          %s140 = sand.u32 %s53, 1
          %s141 = smul.addr %s140, 16
          %s142 = scalar_lea.vmem [#allocation5], %s141
          %s144 = ssub.s32 256, 256
          %145 = vsyncadd %s139, %s144
          %s146 = smul.addr %s17, 2
          %s147 = smul.addr %s146, 128
          %s148 = scalar_lea.hbm %s1, %s147
          %s149 = sshll.u32 %s142, 4
          %s150 = int_to_ptr.vmem [resolvable:$true] %s149
          %155 = dma.hbm_to_vmem [thread:$0]  %s148, 256, %s150, %s139, 128, 128, 8
        $region24: #{tpu_custom_call.1} parent=15 // pred_fallthru
          _
      $region16: #{tpu_custom_call.1} parent=5 // pred_fallthru
        _
      %p156 = scmp.le.s32.totalorder 1, %s17
      %p157 = scmp.lt.s32.totalorder %s17, 3
      %p158 = pnand %p156, %p157
      %p159 = pneg %p158
      // Predicated region
      $region25: #{tpu_custom_call.1} parent=5 // pred_check
        _
      $region26: #{tpu_custom_call.1} parent=5 // pred_check_branch
        %161 = sbr.rel (%p158) target = $region28
      $region27: #{tpu_custom_call.1} parent=5 // pred_region
        %s162 = ssub.s32 %s17, 1
        %s163 = sand.u32 %s30, 1
        %s164 = scalar_lea.sflag [#allocation3], %s163
        %s165 = sand.u32 %s30, 1
        %s166 = smul.addr %s165, 64
        %s167 = scalar_lea.vmem [#allocation2], %s166
        // Predicated region
        $region29: #{tpu_custom_call.1} parent=27 // pred_check
          %p168 = pneg %p43
        $region30: #{tpu_custom_call.1} parent=27 // pred_check_branch
          %170 = sbr.rel (%p168) target = $region32
        $region31: #{tpu_custom_call.1} parent=27 // pred_region
          %171 = dma.done %s164, 1024
        $region32: #{tpu_custom_call.1} parent=27 // pred_fallthru
          _
        %s172 = sand.u32 %s56, 1
        %s173 = scalar_lea.sflag [#allocation6], %s172
        %s174 = sand.u32 %s56, 1
        %s175 = smul.addr %s174, 16
        %s176 = scalar_lea.vmem [#allocation5], %s175
        // Predicated region
        $region33: #{tpu_custom_call.1} parent=27 // pred_check
          %p177 = pneg %p69
        $region34: #{tpu_custom_call.1} parent=27 // pred_check_branch
          %179 = sbr.rel (%p177) target = $region36
        $region35: #{tpu_custom_call.1} parent=27 // pred_region
          %180 = dma.done %s173, 256
        $region36: #{tpu_custom_call.1} parent=27 // pred_fallthru
          _
        %s181 = sand.u32 %s30, 1
        %s182 = scalar_lea.sflag [#allocation3], %s181
        %s183 = sand.u32 %s30, 1
        %s184 = smul.addr %s183, 64
        %s185 = scalar_lea.vmem [#allocation2], %s184
        %p186 = pneg %p43
        %p187 = pneg %p40
        %s188 = sand.u32 %s56, 1
        %s189 = scalar_lea.sflag [#allocation6], %s188
        %s190 = sand.u32 %s56, 1
        %s191 = smul.addr %s190, 16
        %s192 = scalar_lea.vmem [#allocation5], %s191
        %p193 = pneg %p69
        %p194 = pneg %p66
        %p195 = pneg %p95
        %p196 = pneg %p92
        %s197 = sand.u32 %s82, 1
        %s198 = scalar_lea.sflag [#allocation4], %s197
        %s199 = sand.u32 %s82, 1
        %s200 = smul.addr %s199, 2
        %s201 = scalar_lea.vmem [#allocation7], %s200
        %v202 = vld [vmem:[%s167] sm:$0xff]
        %v203 = vld [vmem:[%s167 + $0x8] sm:$0xff]
        %v204 = vld [vmem:[%s167 + $0x10] sm:$0xff]
        %v205 = vld [vmem:[%s167 + $0x18] sm:$0xff]
        %v206 = vld [vmem:[%s167 + $0x20] sm:$0xff]
        %v207 = vld [vmem:[%s167 + $0x28] sm:$0xff]
        %v208 = vld [vmem:[%s167 + $0x30] sm:$0xff]
        %v209 = vld [vmem:[%s167 + $0x38] sm:$0xff]
        %v210 = vld [vmem:[%s176] sm:$0xff]
        %v211 = vld [vmem:[%s176 + $0x8] sm:$0xff]
        %vm212 = vcmask 130048
        %v213 = vsel %vm212, %v202, -inf
        %v214 = vsel %vm212, %v204, -inf
        %v215 = vsel %vm212, %v206, -inf
        %v216 = vmax.f32 %v213, %v215
        %v217 = vsel %vm212, %v208, -inf
        %v218 = vmax.f32 %v214, %v217
        %v219 = vmax.f32 %v216, %v218
        %v220 = vsel %vm212, %v203, -inf
        %v221 = vsel %vm212, %v205, -inf
        %v222 = vsel %vm212, %v207, -inf
        %v223 = vmax.f32 %v220, %v222
        %v224 = vsel %vm212, %v209, -inf
        %v225 = vmax.f32 %v221, %v224
        %v226 = vmax.f32 %v223, %v225
        %v227 = vsub.f32 %v202, %v219
        %v228 = vsub.f32 %v203, %v226
        %v229 = vsub.f32 %v204, %v219
        %v230 = vsub.f32 %v205, %v226
        %v231 = vsub.f32 %v206, %v219
        %v232 = vsub.f32 %v207, %v226
        %v233 = vsub.f32 %v208, %v219
        %v234 = vsub.f32 %v209, %v226
        %v235 = vmul.f32 %v227, 1.442695
        %v236 = vpow.pop %v235
        %v237 = vmul.f32 %v228, 1.442695
        %v238 = vpow.pop %v237
        %v239 = vmul.f32 %v229, 1.442695
        %v240 = vpow.pop %v239
        %v241 = vmul.f32 %v230, 1.442695
        %v242 = vpow.pop %v241
        %v243 = vmul.f32 %v231, 1.442695
        %v244 = vpow.pop %v243
        %v245 = vmul.f32 %v232, 1.442695
        %v246 = vpow.pop %v245
        %v247 = vmul.f32 %v233, 1.442695
        %v248 = vpow.pop %v247
        %v249 = vmul.f32 %v234, 1.442695
        %v250 = vpow.pop %v249
        %v251 = vsel %vm212, %v236, 0.0
        %v252 = vsel %vm212, %v240, 0.0
        %v253 = vadd.f32 %v251, %v252
        %v254 = vsel %vm212, %v244, 0.0
        %v255 = vadd.f32 %v253, %v254
        %v256 = vsel %vm212, %v248, 0.0
        %v257 = vadd.f32 %v255, %v256
        %v258 = vsel %vm212, %v238, 0.0
        %v259 = vsel %vm212, %v242, 0.0
        %v260 = vadd.f32 %v258, %v259
        %v261 = vsel %vm212, %v246, 0.0
        %v262 = vadd.f32 %v260, %v261
        %v263 = vsel %vm212, %v250, 0.0
        %v264 = vadd.f32 %v262, %v263
        %v265 = vrcp.pop %v257
        %v266 = vmul.f32 1.0, %v265
        %v267 = vrcp.pop %v264
        %v268 = vmul.f32 1.0, %v267
        %v269 = vmul.f32 %v236, %v266
        %v270 = vmul.f32 %v238, %v268
        %v271 = vmul.f32 %v240, %v266
        %v272 = vmul.f32 %v242, %v268
        %v273 = vmul.f32 %v244, %v266
        %v274 = vmul.f32 %v246, %v268
        %v275 = vmul.f32 %v248, %v266
        %v276 = vmul.f32 %v250, %v268
        %vm277 = vcmp.eq.s32.totalorder %v210, 0
        %vm278 = vcmp.eq.s32.totalorder %v211, 0
        %vm279 = vcmp.eq.s32.totalorder %v210, 1
        %vm280 = vcmp.eq.s32.totalorder %v211, 1
        %vm281 = vcmp.eq.s32.totalorder %v210, 2
        %vm282 = vcmp.eq.s32.totalorder %v211, 2
        %vm283 = vcmp.eq.s32.totalorder %v210, 3
        %vm284 = vcmp.eq.s32.totalorder %v211, 3
        %v285 = vsel %vm277, 1, 0
        %v286 = vsel %vm278, 1, 0
        %v287 = vsel %vm279, 1, 0
        %v288 = vsel %vm280, 1, 0
        %v289 = vsel %vm281, 1, 0
        %v290 = vsel %vm282, 1, 0
        %v291 = vsel %vm283, 1, 0
        %v292 = vsel %vm284, 1, 0
        %v293 = vcvt.s32.f32 %v285
        %v294 = vcvt.s32.f32 %v286
        %v295 = vcvt.s32.f32 %v287
        %v296 = vcvt.s32.f32 %v288
        %v297 = vcvt.s32.f32 %v289
        %v298 = vcvt.s32.f32 %v290
        %v299 = vcvt.s32.f32 %v291
        %v300 = vcvt.s32.f32 %v292
        %vm301 = vcmp.eq.f32.partialorder %v202, %v219
        %vm302 = vcmp.eq.f32.partialorder %v203, %v226
        %vm303 = vcmp.eq.f32.partialorder %v204, %v219
        %vm304 = vcmp.eq.f32.partialorder %v205, %v226
        %vm305 = vcmp.eq.f32.partialorder %v206, %v219
        %vm306 = vcmp.eq.f32.partialorder %v207, %v226
        %vm307 = vcmp.eq.f32.partialorder %v208, %v219
        %vm308 = vcmp.eq.f32.partialorder %v209, %v226
        %v309 = vsel %vm301, 0, 4
        %v310 = vsel %vm302, 0, 4
        %v311 = vsel %vm303, 1, 4
        %v312 = vsel %vm304, 1, 4
        %v313 = vsel %vm305, 2, 4
        %v314 = vsel %vm306, 2, 4
        %v315 = vsel %vm307, 3, 4
        %v316 = vsel %vm308, 3, 4
        %v317 = vsel %vm212, %v309, 2147483647
        %v318 = vsel %vm212, %v311, 2147483647
        %v319 = vsel %vm212, %v313, 2147483647
        %vm320 = vcmp.lt.s32.totalorder %v317, %v319
        %v321 = vsel %vm320, %v317, %v319
        %v322 = vsel %vm212, %v315, 2147483647
        %vm323 = vcmp.lt.s32.totalorder %v318, %v322
        %v324 = vsel %vm323, %v318, %v322
        %vm325 = vcmp.lt.s32.totalorder %v321, %v324
        %v326 = vsel %vm325, %v321, %v324
        %v327 = vsel %vm212, %v310, 2147483647
        %v328 = vsel %vm212, %v312, 2147483647
        %v329 = vsel %vm212, %v314, 2147483647
        %vm330 = vcmp.lt.s32.totalorder %v327, %v329
        %v331 = vsel %vm330, %v327, %v329
        %v332 = vsel %vm212, %v316, 2147483647
        %vm333 = vcmp.lt.s32.totalorder %v328, %v332
        %v334 = vsel %vm333, %v328, %v332
        %vm335 = vcmp.lt.s32.totalorder %v331, %v334
        %v336 = vsel %vm335, %v331, %v334
        %v337 = vmul.f32 %v269, %v293
        %v338 = vmul.f32 %v270, %v294
        %v339 = vmul.f32 %v271, %v295
        %v340 = vmul.f32 %v272, %v296
        %v341 = vmul.f32 %v273, %v297
        %v342 = vmul.f32 %v274, %v298
        %v343 = vmul.f32 %v275, %v299
        %v344 = vmul.f32 %v276, %v300
        %v345 = vsel %vm212, %v337, 0.0
        %346 = vadd.xlane.f32.xlu0 %v345
        %v347 = vpop.xlane.xlu0 %346
        %v348 = vsel %vm212, %v338, 0.0
        %349 = vadd.xlane.f32.xlu0 %v348
        %v350 = vpop.xlane.xlu0 %349
        %v351 = vsel %vm212, %v339, 0.0
        %352 = vadd.xlane.f32.xlu0 %v351
        %v353 = vpop.xlane.xlu0 %352
        %v354 = vsel %vm212, %v340, 0.0
        %355 = vadd.xlane.f32.xlu0 %v354
        %v356 = vpop.xlane.xlu0 %355
        %v357 = vsel %vm212, %v341, 0.0
        %358 = vadd.xlane.f32.xlu0 %v357
        %v359 = vpop.xlane.xlu0 %358
        %v360 = vsel %vm212, %v342, 0.0
        %361 = vadd.xlane.f32.xlu0 %v360
        %v362 = vpop.xlane.xlu0 %361
        %v363 = vsel %vm212, %v343, 0.0
        %364 = vadd.xlane.f32.xlu0 %v363
        %v365 = vpop.xlane.xlu0 %364
        %v366 = vsel %vm212, %v344, 0.0
        %367 = vadd.xlane.f32.xlu0 %v366
        %v368 = vpop.xlane.xlu0 %367
        %v377 = vlaneseq
        %v378 = vand.u32 %v377, 127
        %v379 = vlaneseq
        %v380 = vshrl.u32 %v379, 7
        %v381 = vsub.s32 %v378, %v380
        %v382 = vrot.slane %v347, %v381
        %v383 = vadd.s32 %v378, 4294967288
        %v384 = vlaneseq
        %v385 = vshrl.u32 %v384, 7
        %v386 = vsub.s32 %v383, %v385
        %v387 = vrot.slane %v350, %v386
        %vm388 = vcmask 130112
        %v389 = vsel %vm388, %v387, %v382
        %v390 = vlaneseq
        %v391 = vshrl.u32 %v390, 7
        %v392 = vsub.s32 %v378, %v391
        %v393 = vrot.slane %v353, %v392
        %v394 = vlaneseq
        %v395 = vshrl.u32 %v394, 7
        %v396 = vsub.s32 %v383, %v395
        %v397 = vrot.slane %v356, %v396
        %v398 = vsel %vm388, %v397, %v393
        %v399 = vlaneseq
        %v400 = vshrl.u32 %v399, 7
        %v401 = vsub.s32 %v378, %v400
        %v402 = vrot.slane %v359, %v401
        %v403 = vlaneseq
        %v404 = vshrl.u32 %v403, 7
        %v405 = vsub.s32 %v383, %v404
        %v406 = vrot.slane %v362, %v405
        %v407 = vsel %vm388, %v406, %v402
        %v408 = vlaneseq
        %v409 = vshrl.u32 %v408, 7
        %v410 = vsub.s32 %v378, %v409
        %v411 = vrot.slane %v365, %v410
        %v412 = vlaneseq
        %v413 = vshrl.u32 %v412, 7
        %v414 = vsub.s32 %v383, %v413
        %v415 = vrot.slane %v368, %v414
        %v416 = vsel %vm388, %v415, %v411
        %vm417 = vcmask 1041409
        %v418 = vsel %vm417, %v398, %v389
        %vm419 = vcmask 1042434
        %v420 = vsel %vm419, %v407, %v418
        %vm421 = vcmask 1043459
        %v422 = vsel %vm421, %v416, %v420
        %vm424 = vcmask 125952
        %v425 = vsel %vm424, %v422, 0.0
        %426 = vadd.xlane.f32.xlu0 %v425
        %v427 = vpop.xlane.xlu0 %426
        %v428 = vsel %vm212, %v269, 0.0
        %429 = vadd.xlane.f32.xlu0 %v428
        %v430 = vpop.xlane.xlu0 %429
        %v431 = vsel %vm212, %v270, 0.0
        %432 = vadd.xlane.f32.xlu0 %v431
        %v433 = vpop.xlane.xlu0 %432
        %v434 = vsel %vm212, %v271, 0.0
        %435 = vadd.xlane.f32.xlu0 %v434
        %v436 = vpop.xlane.xlu0 %435
        %v437 = vsel %vm212, %v272, 0.0
        %438 = vadd.xlane.f32.xlu0 %v437
        %v439 = vpop.xlane.xlu0 %438
        %v440 = vsel %vm212, %v273, 0.0
        %441 = vadd.xlane.f32.xlu0 %v440
        %v442 = vpop.xlane.xlu0 %441
        %v443 = vsel %vm212, %v274, 0.0
        %444 = vadd.xlane.f32.xlu0 %v443
        %v445 = vpop.xlane.xlu0 %444
        %v446 = vsel %vm212, %v275, 0.0
        %447 = vadd.xlane.f32.xlu0 %v446
        %v448 = vpop.xlane.xlu0 %447
        %v449 = vsel %vm212, %v276, 0.0
        %450 = vadd.xlane.f32.xlu0 %v449
        %v451 = vpop.xlane.xlu0 %450
        %v460 = vlaneseq
        %v461 = vshrl.u32 %v460, 7
        %v462 = vsub.s32 %v378, %v461
        %v463 = vrot.slane %v430, %v462
        %v464 = vlaneseq
        %v465 = vshrl.u32 %v464, 7
        %v466 = vsub.s32 %v383, %v465
        %v467 = vrot.slane %v433, %v466
        %v468 = vsel %vm388, %v467, %v463
        %v469 = vlaneseq
        %v470 = vshrl.u32 %v469, 7
        %v471 = vsub.s32 %v378, %v470
        %v472 = vrot.slane %v436, %v471
        %v473 = vlaneseq
        %v474 = vshrl.u32 %v473, 7
        %v475 = vsub.s32 %v383, %v474
        %v476 = vrot.slane %v439, %v475
        %v477 = vsel %vm388, %v476, %v472
        %v478 = vlaneseq
        %v479 = vshrl.u32 %v478, 7
        %v480 = vsub.s32 %v378, %v479
        %v481 = vrot.slane %v442, %v480
        %v482 = vlaneseq
        %v483 = vshrl.u32 %v482, 7
        %v484 = vsub.s32 %v383, %v483
        %v485 = vrot.slane %v445, %v484
        %v486 = vsel %vm388, %v485, %v481
        %v487 = vlaneseq
        %v488 = vshrl.u32 %v487, 7
        %v489 = vsub.s32 %v378, %v488
        %v490 = vrot.slane %v448, %v489
        %v491 = vlaneseq
        %v492 = vshrl.u32 %v491, 7
        %v493 = vsub.s32 %v383, %v492
        %v494 = vrot.slane %v451, %v493
        %v495 = vsel %vm388, %v494, %v490
        %v496 = vsel %vm417, %v477, %v468
        %v497 = vsel %vm419, %v486, %v496
        %v498 = vsel %vm421, %v495, %v497
        %v500 = vsel %vm424, %v498, 0.0
        %501 = vadd.xlane.f32.xlu0 %v500
        %v502 = vpop.xlane.xlu0 %501
        %v503 = vsel %vm212, %v293, 0.0
        %504 = vadd.xlane.f32.xlu0 %v503
        %v505 = vpop.xlane.xlu0 %504
        %v506 = vsel %vm212, %v294, 0.0
        %507 = vadd.xlane.f32.xlu0 %v506
        %v508 = vpop.xlane.xlu0 %507
        %v509 = vsel %vm212, %v295, 0.0
        %510 = vadd.xlane.f32.xlu0 %v509
        %v511 = vpop.xlane.xlu0 %510
        %v512 = vsel %vm212, %v296, 0.0
        %513 = vadd.xlane.f32.xlu0 %v512
        %v514 = vpop.xlane.xlu0 %513
        %v515 = vsel %vm212, %v297, 0.0
        %516 = vadd.xlane.f32.xlu0 %v515
        %v517 = vpop.xlane.xlu0 %516
        %v518 = vsel %vm212, %v298, 0.0
        %519 = vadd.xlane.f32.xlu0 %v518
        %v520 = vpop.xlane.xlu0 %519
        %v521 = vsel %vm212, %v299, 0.0
        %522 = vadd.xlane.f32.xlu0 %v521
        %v523 = vpop.xlane.xlu0 %522
        %v524 = vsel %vm212, %v300, 0.0
        %525 = vadd.xlane.f32.xlu0 %v524
        %v526 = vpop.xlane.xlu0 %525
        %v535 = vlaneseq
        %v536 = vshrl.u32 %v535, 7
        %v537 = vsub.s32 %v378, %v536
        %v538 = vrot.slane %v505, %v537
        %v539 = vlaneseq
        %v540 = vshrl.u32 %v539, 7
        %v541 = vsub.s32 %v383, %v540
        %v542 = vrot.slane %v508, %v541
        %v543 = vsel %vm388, %v542, %v538
        %v544 = vlaneseq
        %v545 = vshrl.u32 %v544, 7
        %v546 = vsub.s32 %v378, %v545
        %v547 = vrot.slane %v511, %v546
        %v548 = vlaneseq
        %v549 = vshrl.u32 %v548, 7
        %v550 = vsub.s32 %v383, %v549
        %v551 = vrot.slane %v514, %v550
        %v552 = vsel %vm388, %v551, %v547
        %v553 = vlaneseq
        %v554 = vshrl.u32 %v553, 7
        %v555 = vsub.s32 %v378, %v554
        %v556 = vrot.slane %v517, %v555
        %v557 = vlaneseq
        %v558 = vshrl.u32 %v557, 7
        %v559 = vsub.s32 %v383, %v558
        %v560 = vrot.slane %v520, %v559
        %v561 = vsel %vm388, %v560, %v556
        %v562 = vlaneseq
        %v563 = vshrl.u32 %v562, 7
        %v564 = vsub.s32 %v378, %v563
        %v565 = vrot.slane %v523, %v564
        %v566 = vlaneseq
        %v567 = vshrl.u32 %v566, 7
        %v568 = vsub.s32 %v383, %v567
        %v569 = vrot.slane %v526, %v568
        %v570 = vsel %vm388, %v569, %v565
        %v571 = vsel %vm417, %v552, %v543
        %v572 = vsel %vm419, %v561, %v571
        %v573 = vsel %vm421, %v570, %v572
        %v575 = vsel %vm424, %v573, 0.0
        %576 = vadd.xlane.f32.xlu0 %v575
        %v577 = vpop.xlane.xlu0 %576
        %v578 = vadd.f32 %v502, %v577
        %v579 = vsub.f32 %v578, %v427
        %v580 = vadd.f32 %v427, 1e-24
        %v581 = vadd.f32 %v579, 1e-24
        %v582 = vrcp.pop %v581
        %v583 = vmul.f32 %v580, %v582
        %v584 = vsub.f32 1.0, %v583
        %v585 = vlaneseq
        %v586 = vshrl.u32 %v585, 7
        %v587 = vadd.s32 %v586, 8
        %vm588 = vcmp.ge.s32.totalorder %v586, 3
        %vm589 = vcmp.ge.s32.totalorder %v587, 3
        %vm590 = vcmp.lt.s32.totalorder %v586, 13
        %vm591 = vcmp.lt.s32.totalorder %v587, 13
        %vm592 = vmand %vm588, %vm590
        %vm593 = vmand %vm589, %vm591
        %vm594 = vcmp.ge.s32.totalorder %v378, 3
        %vm595 = vmand %vm592, %vm594
        %vm596 = vmand %vm593, %vm594
        %vm597 = vcmp.lt.s32.totalorder %v378, 13
        %vm598 = vmand %vm595, %vm597
        %vm599 = vmand %vm596, %vm597
        %vm600 = vcmask 1047680
        %601 = vrot.lane.b32.xlu0 %v210, 16
        %v602 = vpop.permute.xlu0 %601
        %v603 = vsel %vm600, %v602, %v210
        %604 = vrot.lane.b32.xlu0 %v211, 16
        %v605 = vpop.permute.xlu0 %604
        %v606 = vsel %vm600, %v605, %v211
        %607 = vrot.lane.b32.xlu0 %v603, 16
        %v608 = vpop.permute.xlu0 %607
        %609 = vrot.lane.b32.xlu0 %v606, 16
        %v610 = vpop.permute.xlu0 %609
        %v611 = vsel %vm600, %v608, %v210
        %v612 = vsel %vm600, %v610, %v211
        %613 = vrot.lane.b32.xlu0 %v611, 114
        %v614 = vpop.permute.xlu0 %613
        %615 = vrot.lane.b32.xlu0 %v612, 114
        %v616 = vpop.permute.xlu0 %615
        %vm617 = vcmp.lt.s32.totalorder %v611, %v614
        %v618 = vsel %vm617, %v611, %v614
        %vm619 = vcmp.lt.s32.totalorder %v612, %v616
        %v620 = vsel %vm619, %v612, %v616
        %621 = vrot.lane.b32.xlu0 %v618, 127
        %v622 = vpop.permute.xlu0 %621
        %623 = vrot.lane.b32.xlu0 %v620, 127
        %v624 = vpop.permute.xlu0 %623
        %vm625 = vcmp.lt.s32.totalorder %v210, %v622
        %v626 = vsel %vm625, %v210, %v622
        %vm627 = vcmp.lt.s32.totalorder %v211, %v624
        %v628 = vsel %vm627, %v211, %v624
        %vm629 = vcmp.gt.s32.totalorder %v611, %v614
        %v630 = vsel %vm629, %v611, %v614
        %vm631 = vcmp.gt.s32.totalorder %v612, %v616
        %v632 = vsel %vm631, %v612, %v616
        %633 = vrot.lane.b32.xlu0 %v630, 127
        %v634 = vpop.permute.xlu0 %633
        %635 = vrot.lane.b32.xlu0 %v632, 127
        %v636 = vpop.permute.xlu0 %635
        %vm637 = vcmp.gt.s32.totalorder %v210, %v634
        %v638 = vsel %vm637, %v210, %v634
        %vm639 = vcmp.gt.s32.totalorder %v211, %v636
        %v640 = vsel %vm639, %v211, %v636
        %641 = vrot.lane.b32.xlu0 %v611, 116
        %v642 = vpop.permute.xlu0 %641
        %643 = vrot.lane.b32.xlu0 %v612, 116
        %v644 = vpop.permute.xlu0 %643
        %vm645 = vcmp.lt.s32.totalorder %v611, %v642
        %v646 = vsel %vm645, %v611, %v642
        %vm647 = vcmp.lt.s32.totalorder %v612, %v644
        %v648 = vsel %vm647, %v612, %v644
        %649 = vrot.lane.b32.xlu0 %v646, 126
        %v650 = vpop.permute.xlu0 %649
        %651 = vrot.lane.b32.xlu0 %v648, 126
        %v652 = vpop.permute.xlu0 %651
        %vm653 = vcmp.lt.s32.totalorder %v626, %v650
        %v654 = vsel %vm653, %v626, %v650
        %vm655 = vcmp.lt.s32.totalorder %v628, %v652
        %v656 = vsel %vm655, %v628, %v652
        %vm657 = vcmp.gt.s32.totalorder %v611, %v642
        %v658 = vsel %vm657, %v611, %v642
        %vm659 = vcmp.gt.s32.totalorder %v612, %v644
        %v660 = vsel %vm659, %v612, %v644
        %661 = vrot.lane.b32.xlu0 %v658, 126
        %v662 = vpop.permute.xlu0 %661
        %663 = vrot.lane.b32.xlu0 %v660, 126
        %v664 = vpop.permute.xlu0 %663
        %vm665 = vcmp.gt.s32.totalorder %v638, %v662
        %v666 = vsel %vm665, %v638, %v662
        %vm667 = vcmp.gt.s32.totalorder %v640, %v664
        %v668 = vsel %vm667, %v640, %v664
        %669 = vrot.lane.b32.xlu0 %v611, 118
        %v670 = vpop.permute.xlu0 %669
        %671 = vrot.lane.b32.xlu0 %v612, 118
        %v672 = vpop.permute.xlu0 %671
        %vm673 = vcmp.lt.s32.totalorder %v611, %v670
        %v674 = vsel %vm673, %v611, %v670
        %vm675 = vcmp.lt.s32.totalorder %v612, %v672
        %v676 = vsel %vm675, %v612, %v672
        %677 = vrot.lane.b32.xlu0 %v674, 125
        %v678 = vpop.permute.xlu0 %677
        %679 = vrot.lane.b32.xlu0 %v676, 125
        %v680 = vpop.permute.xlu0 %679
        %vm681 = vcmp.lt.s32.totalorder %v654, %v678
        %v682 = vsel %vm681, %v654, %v678
        %vm683 = vcmp.lt.s32.totalorder %v656, %v680
        %v684 = vsel %vm683, %v656, %v680
        %vm685 = vcmp.gt.s32.totalorder %v611, %v670
        %v686 = vsel %vm685, %v611, %v670
        %vm687 = vcmp.gt.s32.totalorder %v612, %v672
        %v688 = vsel %vm687, %v612, %v672
        %689 = vrot.lane.b32.xlu0 %v686, 125
        %v690 = vpop.permute.xlu0 %689
        %691 = vrot.lane.b32.xlu0 %v688, 125
        %v692 = vpop.permute.xlu0 %691
        %vm693 = vcmp.gt.s32.totalorder %v666, %v690
        %v694 = vsel %vm693, %v666, %v690
        %vm695 = vcmp.gt.s32.totalorder %v668, %v692
        %v696 = vsel %vm695, %v668, %v692
        %v697 = vrot.slane %v682, 1
        %v698 = vrot.slane %v684, 1
        %vm699 = vcmp.lt.s32.totalorder %v586, 7
        %v700 = vsel %vm699, %v697, %v698
        %v701 = vsel %vm699, %v698, %v697
        %v702 = vrot.slane %v682, 7
        %v703 = vrot.slane %v684, 7
        %vm704 = vcmp.lt.s32.totalorder %v586, 1
        %v705 = vsel %vm704, %v702, %v703
        %v706 = vsel %vm704, %v703, %v702
        %vm707 = vcmp.lt.s32.totalorder %v700, %v706
        %v708 = vsel %vm707, %v700, %v706
        %vm709 = vcmp.lt.s32.totalorder %v701, %v705
        %v710 = vsel %vm709, %v701, %v705
        %vm711 = vcmp.lt.s32.totalorder %v682, %v708
        %v712 = vsel %vm711, %v682, %v708
        %vm713 = vcmp.lt.s32.totalorder %v684, %v710
        %v714 = vsel %vm713, %v684, %v710
        %v715 = vrot.slane %v694, 1
        %v716 = vrot.slane %v696, 1
        %v717 = vsel %vm699, %v715, %v716
        %v718 = vsel %vm699, %v716, %v715
        %v719 = vrot.slane %v694, 7
        %v720 = vrot.slane %v696, 7
        %v721 = vsel %vm704, %v719, %v720
        %v722 = vsel %vm704, %v720, %v719
        %vm723 = vcmp.gt.s32.totalorder %v717, %v722
        %v724 = vsel %vm723, %v717, %v722
        %vm725 = vcmp.gt.s32.totalorder %v718, %v721
        %v726 = vsel %vm725, %v718, %v721
        %vm727 = vcmp.gt.s32.totalorder %v694, %v724
        %v728 = vsel %vm727, %v694, %v724
        %vm729 = vcmp.gt.s32.totalorder %v696, %v726
        %v730 = vsel %vm729, %v696, %v726
        %v731 = vrot.slane %v682, 2
        %v732 = vrot.slane %v684, 2
        %vm733 = vcmp.lt.s32.totalorder %v586, 6
        %v734 = vsel %vm733, %v731, %v732
        %v735 = vsel %vm733, %v732, %v731
        %v736 = vrot.slane %v682, 6
        %v737 = vrot.slane %v684, 6
        %vm738 = vcmp.lt.s32.totalorder %v586, 2
        %v739 = vsel %vm738, %v736, %v737
        %v740 = vsel %vm738, %v737, %v736
        %vm741 = vcmp.lt.s32.totalorder %v734, %v740
        %v742 = vsel %vm741, %v734, %v740
        %vm743 = vcmp.lt.s32.totalorder %v735, %v739
        %v744 = vsel %vm743, %v735, %v739
        %vm745 = vcmp.lt.s32.totalorder %v712, %v742
        %v746 = vsel %vm745, %v712, %v742
        %vm747 = vcmp.lt.s32.totalorder %v714, %v744
        %v748 = vsel %vm747, %v714, %v744
        %v749 = vrot.slane %v694, 2
        %v750 = vrot.slane %v696, 2
        %v751 = vsel %vm733, %v749, %v750
        %v752 = vsel %vm733, %v750, %v749
        %v753 = vrot.slane %v694, 6
        %v754 = vrot.slane %v696, 6
        %v755 = vsel %vm738, %v753, %v754
        %v756 = vsel %vm738, %v754, %v753
        %vm757 = vcmp.gt.s32.totalorder %v751, %v756
        %v758 = vsel %vm757, %v751, %v756
        %vm759 = vcmp.gt.s32.totalorder %v752, %v755
        %v760 = vsel %vm759, %v752, %v755
        %vm761 = vcmp.gt.s32.totalorder %v728, %v758
        %v762 = vsel %vm761, %v728, %v758
        %vm763 = vcmp.gt.s32.totalorder %v730, %v760
        %v764 = vsel %vm763, %v730, %v760
        %v765 = vrot.slane %v682, 3
        %v766 = vrot.slane %v684, 3
        %vm767 = vcmp.lt.s32.totalorder %v586, 5
        %v768 = vsel %vm767, %v765, %v766
        %v769 = vsel %vm767, %v766, %v765
        %v770 = vrot.slane %v682, 5
        %v771 = vrot.slane %v684, 5
        %vm772 = vcmp.lt.s32.totalorder %v586, 3
        %v773 = vsel %vm772, %v770, %v771
        %v774 = vsel %vm772, %v771, %v770
        %vm775 = vcmp.lt.s32.totalorder %v768, %v774
        %v776 = vsel %vm775, %v768, %v774
        %vm777 = vcmp.lt.s32.totalorder %v769, %v773
        %v778 = vsel %vm777, %v769, %v773
        %vm779 = vcmp.lt.s32.totalorder %v746, %v776
        %v780 = vsel %vm779, %v746, %v776
        %vm781 = vcmp.lt.s32.totalorder %v748, %v778
        %v782 = vsel %vm781, %v748, %v778
        %v783 = vrot.slane %v694, 3
        %v784 = vrot.slane %v696, 3
        %v785 = vsel %vm767, %v783, %v784
        %v786 = vsel %vm767, %v784, %v783
        %v787 = vrot.slane %v694, 5
        %v788 = vrot.slane %v696, 5
        %v789 = vsel %vm772, %v787, %v788
        %v790 = vsel %vm772, %v788, %v787
        %vm791 = vcmp.gt.s32.totalorder %v785, %v790
        %v792 = vsel %vm791, %v785, %v790
        %vm793 = vcmp.gt.s32.totalorder %v786, %v789
        %v794 = vsel %vm793, %v786, %v789
        %vm795 = vcmp.gt.s32.totalorder %v762, %v792
        %v796 = vsel %vm795, %v762, %v792
        %vm797 = vcmp.gt.s32.totalorder %v764, %v794
        %v798 = vsel %vm797, %v764, %v794
        %799 = vrot.lane.b32.xlu0 %v326, 16
        %v800 = vpop.permute.xlu0 %799
        %v801 = vsel %vm600, %v800, %v326
        %802 = vrot.lane.b32.xlu0 %v336, 16
        %v803 = vpop.permute.xlu0 %802
        %v804 = vsel %vm600, %v803, %v336
        %805 = vrot.lane.b32.xlu0 %v801, 16
        %v806 = vpop.permute.xlu0 %805
        %807 = vrot.lane.b32.xlu0 %v804, 16
        %v808 = vpop.permute.xlu0 %807
        %v809 = vsel %vm600, %v806, %v326
        %v810 = vsel %vm600, %v808, %v336
        %811 = vrot.lane.b32.xlu0 %v809, 114
        %v812 = vpop.permute.xlu0 %811
        %813 = vrot.lane.b32.xlu0 %v810, 114
        %v814 = vpop.permute.xlu0 %813
        %vm815 = vcmp.lt.s32.totalorder %v809, %v812
        %v816 = vsel %vm815, %v809, %v812
        %vm817 = vcmp.lt.s32.totalorder %v810, %v814
        %v818 = vsel %vm817, %v810, %v814
        %819 = vrot.lane.b32.xlu0 %v816, 127
        %v820 = vpop.permute.xlu0 %819
        %821 = vrot.lane.b32.xlu0 %v818, 127
        %v822 = vpop.permute.xlu0 %821
        %vm823 = vcmp.lt.s32.totalorder %v326, %v820
        %v824 = vsel %vm823, %v326, %v820
        %vm825 = vcmp.lt.s32.totalorder %v336, %v822
        %v826 = vsel %vm825, %v336, %v822
        %vm827 = vcmp.gt.s32.totalorder %v809, %v812
        %v828 = vsel %vm827, %v809, %v812
        %vm829 = vcmp.gt.s32.totalorder %v810, %v814
        %v830 = vsel %vm829, %v810, %v814
        %831 = vrot.lane.b32.xlu0 %v828, 127
        %v832 = vpop.permute.xlu0 %831
        %833 = vrot.lane.b32.xlu0 %v830, 127
        %v834 = vpop.permute.xlu0 %833
        %vm835 = vcmp.gt.s32.totalorder %v326, %v832
        %v836 = vsel %vm835, %v326, %v832
        %vm837 = vcmp.gt.s32.totalorder %v336, %v834
        %v838 = vsel %vm837, %v336, %v834
        %839 = vrot.lane.b32.xlu0 %v809, 116
        %v840 = vpop.permute.xlu0 %839
        %841 = vrot.lane.b32.xlu0 %v810, 116
        %v842 = vpop.permute.xlu0 %841
        %vm843 = vcmp.lt.s32.totalorder %v809, %v840
        %v844 = vsel %vm843, %v809, %v840
        %vm845 = vcmp.lt.s32.totalorder %v810, %v842
        %v846 = vsel %vm845, %v810, %v842
        %847 = vrot.lane.b32.xlu0 %v844, 126
        %v848 = vpop.permute.xlu0 %847
        %849 = vrot.lane.b32.xlu0 %v846, 126
        %v850 = vpop.permute.xlu0 %849
        %vm851 = vcmp.lt.s32.totalorder %v824, %v848
        %v852 = vsel %vm851, %v824, %v848
        %vm853 = vcmp.lt.s32.totalorder %v826, %v850
        %v854 = vsel %vm853, %v826, %v850
        %vm855 = vcmp.gt.s32.totalorder %v809, %v840
        %v856 = vsel %vm855, %v809, %v840
        %vm857 = vcmp.gt.s32.totalorder %v810, %v842
        %v858 = vsel %vm857, %v810, %v842
        %859 = vrot.lane.b32.xlu0 %v856, 126
        %v860 = vpop.permute.xlu0 %859
        %861 = vrot.lane.b32.xlu0 %v858, 126
        %v862 = vpop.permute.xlu0 %861
        %vm863 = vcmp.gt.s32.totalorder %v836, %v860
        %v864 = vsel %vm863, %v836, %v860
        %vm865 = vcmp.gt.s32.totalorder %v838, %v862
        %v866 = vsel %vm865, %v838, %v862
        %867 = vrot.lane.b32.xlu0 %v809, 118
        %v868 = vpop.permute.xlu0 %867
        %869 = vrot.lane.b32.xlu0 %v810, 118
        %v870 = vpop.permute.xlu0 %869
        %vm871 = vcmp.lt.s32.totalorder %v809, %v868
        %v872 = vsel %vm871, %v809, %v868
        %vm873 = vcmp.lt.s32.totalorder %v810, %v870
        %v874 = vsel %vm873, %v810, %v870
        %875 = vrot.lane.b32.xlu0 %v872, 125
        %v876 = vpop.permute.xlu0 %875
        %877 = vrot.lane.b32.xlu0 %v874, 125
        %v878 = vpop.permute.xlu0 %877
        %vm879 = vcmp.lt.s32.totalorder %v852, %v876
        %v880 = vsel %vm879, %v852, %v876
        %vm881 = vcmp.lt.s32.totalorder %v854, %v878
        %v882 = vsel %vm881, %v854, %v878
        %vm883 = vcmp.gt.s32.totalorder %v809, %v868
        %v884 = vsel %vm883, %v809, %v868
        %vm885 = vcmp.gt.s32.totalorder %v810, %v870
        %v886 = vsel %vm885, %v810, %v870
        %887 = vrot.lane.b32.xlu0 %v884, 125
        %v888 = vpop.permute.xlu0 %887
        %889 = vrot.lane.b32.xlu0 %v886, 125
        %v890 = vpop.permute.xlu0 %889
        %vm891 = vcmp.gt.s32.totalorder %v864, %v888
        %v892 = vsel %vm891, %v864, %v888
        %vm893 = vcmp.gt.s32.totalorder %v866, %v890
        %v894 = vsel %vm893, %v866, %v890
        %v895 = vrot.slane %v880, 1
        %v896 = vrot.slane %v882, 1
        %v897 = vsel %vm699, %v895, %v896
        %v898 = vsel %vm699, %v896, %v895
        %v899 = vrot.slane %v880, 7
        %v900 = vrot.slane %v882, 7
        %v901 = vsel %vm704, %v899, %v900
        %v902 = vsel %vm704, %v900, %v899
        %vm903 = vcmp.lt.s32.totalorder %v897, %v902
        %v904 = vsel %vm903, %v897, %v902
        %vm905 = vcmp.lt.s32.totalorder %v898, %v901
        %v906 = vsel %vm905, %v898, %v901
        %vm907 = vcmp.lt.s32.totalorder %v880, %v904
        %v908 = vsel %vm907, %v880, %v904
        %vm909 = vcmp.lt.s32.totalorder %v882, %v906
        %v910 = vsel %vm909, %v882, %v906
        %v911 = vrot.slane %v892, 1
        %v912 = vrot.slane %v894, 1
        %v913 = vsel %vm699, %v911, %v912
        %v914 = vsel %vm699, %v912, %v911
        %v915 = vrot.slane %v892, 7
        %v916 = vrot.slane %v894, 7
        %v917 = vsel %vm704, %v915, %v916
        %v918 = vsel %vm704, %v916, %v915
        %vm919 = vcmp.gt.s32.totalorder %v913, %v918
        %v920 = vsel %vm919, %v913, %v918
        %vm921 = vcmp.gt.s32.totalorder %v914, %v917
        %v922 = vsel %vm921, %v914, %v917
        %vm923 = vcmp.gt.s32.totalorder %v892, %v920
        %v924 = vsel %vm923, %v892, %v920
        %vm925 = vcmp.gt.s32.totalorder %v894, %v922
        %v926 = vsel %vm925, %v894, %v922
        %v927 = vrot.slane %v880, 2
        %v928 = vrot.slane %v882, 2
        %v929 = vsel %vm733, %v927, %v928
        %v930 = vsel %vm733, %v928, %v927
        %v931 = vrot.slane %v880, 6
        %v932 = vrot.slane %v882, 6
        %v933 = vsel %vm738, %v931, %v932
        %v934 = vsel %vm738, %v932, %v931
        %vm935 = vcmp.lt.s32.totalorder %v929, %v934
        %v936 = vsel %vm935, %v929, %v934
        %vm937 = vcmp.lt.s32.totalorder %v930, %v933
        %v938 = vsel %vm937, %v930, %v933
        %vm939 = vcmp.lt.s32.totalorder %v908, %v936
        %v940 = vsel %vm939, %v908, %v936
        %vm941 = vcmp.lt.s32.totalorder %v910, %v938
        %v942 = vsel %vm941, %v910, %v938
        %v943 = vrot.slane %v892, 2
        %v944 = vrot.slane %v894, 2
        %v945 = vsel %vm733, %v943, %v944
        %v946 = vsel %vm733, %v944, %v943
        %v947 = vrot.slane %v892, 6
        %v948 = vrot.slane %v894, 6
        %v949 = vsel %vm738, %v947, %v948
        %v950 = vsel %vm738, %v948, %v947
        %vm951 = vcmp.gt.s32.totalorder %v945, %v950
        %v952 = vsel %vm951, %v945, %v950
        %vm953 = vcmp.gt.s32.totalorder %v946, %v949
        %v954 = vsel %vm953, %v946, %v949
        %vm955 = vcmp.gt.s32.totalorder %v924, %v952
        %v956 = vsel %vm955, %v924, %v952
        %vm957 = vcmp.gt.s32.totalorder %v926, %v954
        %v958 = vsel %vm957, %v926, %v954
        %v959 = vrot.slane %v880, 3
        %v960 = vrot.slane %v882, 3
        %v961 = vsel %vm767, %v959, %v960
        %v962 = vsel %vm767, %v960, %v959
        %v963 = vrot.slane %v880, 5
        %v964 = vrot.slane %v882, 5
        %v965 = vsel %vm772, %v963, %v964
        %v966 = vsel %vm772, %v964, %v963
        %vm967 = vcmp.lt.s32.totalorder %v961, %v966
        %v968 = vsel %vm967, %v961, %v966
        %vm969 = vcmp.lt.s32.totalorder %v962, %v965
        %v970 = vsel %vm969, %v962, %v965
        %vm971 = vcmp.lt.s32.totalorder %v940, %v968
        %v972 = vsel %vm971, %v940, %v968
        %vm973 = vcmp.lt.s32.totalorder %v942, %v970
        %v974 = vsel %vm973, %v942, %v970
        %v975 = vrot.slane %v892, 3
        %v976 = vrot.slane %v894, 3
        %v977 = vsel %vm767, %v975, %v976
        %v978 = vsel %vm767, %v976, %v975
        %v979 = vrot.slane %v892, 5
        %v980 = vrot.slane %v894, 5
        %v981 = vsel %vm772, %v979, %v980
        %v982 = vsel %vm772, %v980, %v979
        %vm983 = vcmp.gt.s32.totalorder %v977, %v982
        %v984 = vsel %vm983, %v977, %v982
        %vm985 = vcmp.gt.s32.totalorder %v978, %v981
        %v986 = vsel %vm985, %v978, %v981
        %vm987 = vcmp.gt.s32.totalorder %v956, %v984
        %v988 = vsel %vm987, %v956, %v984
        %vm989 = vcmp.gt.s32.totalorder %v958, %v986
        %v990 = vsel %vm989, %v958, %v986
        %vm991 = vcmp.eq.s32.totalorder %v780, %v796
        %vm992 = vcmp.eq.s32.totalorder %v782, %v798
        %vm993 = vmand %vm991, %vm598
        %vm994 = vmand %vm992, %vm599
        %v995 = vsel %vm993, 0.0, 1.0
        %v996 = vsel %vm994, 0.0, 1.0
        %vm997 = vcmp.eq.s32.totalorder %v972, %v988
        %vm998 = vcmp.eq.s32.totalorder %v974, %v990
        %vm999 = vmand %vm997, %vm598
        %vm1000 = vmand %vm998, %vm599
        %v1001 = vsel %vm999, 0.0, 1.0
        %v1002 = vsel %vm1000, 0.0, 1.0
        %vm1003 = vcmp.eq.s32.totalorder %v326, %v210
        %vm1004 = vcmp.eq.s32.totalorder %v336, %v211
        %v1005 = vsel %vm1003, 1, 0
        %v1006 = vsel %vm1004, 1, 0
        %v1007 = vcvt.s32.f32 %v1005
        %v1008 = vcvt.s32.f32 %v1006
        %v1009 = vmul.f32 %v1007, %v1001
        %v1010 = vmul.f32 %v1008, %v1002
        %v1011 = vmul.f32 %v1009, %v995
        %v1012 = vmul.f32 %v1010, %v996
        %v1013 = vmul.f32 %v337, %v1011
        %v1014 = vmul.f32 %v338, %v1012
        %v1015 = vmul.f32 %v339, %v1011
        %v1016 = vmul.f32 %v340, %v1012
        %v1017 = vmul.f32 %v341, %v1011
        %v1018 = vmul.f32 %v342, %v1012
        %v1019 = vmul.f32 %v343, %v1011
        %v1020 = vmul.f32 %v344, %v1012
        %v1021 = vsel %vm212, %v1013, 0.0
        %1022 = vadd.xlane.f32.xlu0 %v1021
        %v1023 = vpop.xlane.xlu0 %1022
        %v1024 = vsel %vm212, %v1014, 0.0
        %1025 = vadd.xlane.f32.xlu0 %v1024
        %v1026 = vpop.xlane.xlu0 %1025
        %v1027 = vsel %vm212, %v1015, 0.0
        %1028 = vadd.xlane.f32.xlu0 %v1027
        %v1029 = vpop.xlane.xlu0 %1028
        %v1030 = vsel %vm212, %v1016, 0.0
        %1031 = vadd.xlane.f32.xlu0 %v1030
        %v1032 = vpop.xlane.xlu0 %1031
        %v1033 = vsel %vm212, %v1017, 0.0
        %1034 = vadd.xlane.f32.xlu0 %v1033
        %v1035 = vpop.xlane.xlu0 %1034
        %v1036 = vsel %vm212, %v1018, 0.0
        %1037 = vadd.xlane.f32.xlu0 %v1036
        %v1038 = vpop.xlane.xlu0 %1037
        %v1039 = vsel %vm212, %v1019, 0.0
        %1040 = vadd.xlane.f32.xlu0 %v1039
        %v1041 = vpop.xlane.xlu0 %1040
        %v1042 = vsel %vm212, %v1020, 0.0
        %1043 = vadd.xlane.f32.xlu0 %v1042
        %v1044 = vpop.xlane.xlu0 %1043
        %v1053 = vlaneseq
        %v1054 = vshrl.u32 %v1053, 7
        %v1055 = vsub.s32 %v378, %v1054
        %v1056 = vrot.slane %v1023, %v1055
        %v1057 = vlaneseq
        %v1058 = vshrl.u32 %v1057, 7
        %v1059 = vsub.s32 %v383, %v1058
        %v1060 = vrot.slane %v1026, %v1059
        %v1061 = vsel %vm388, %v1060, %v1056
        %v1062 = vlaneseq
        %v1063 = vshrl.u32 %v1062, 7
        %v1064 = vsub.s32 %v378, %v1063
        %v1065 = vrot.slane %v1029, %v1064
        %v1066 = vlaneseq
        %v1067 = vshrl.u32 %v1066, 7
        %v1068 = vsub.s32 %v383, %v1067
        %v1069 = vrot.slane %v1032, %v1068
        %v1070 = vsel %vm388, %v1069, %v1065
        %v1071 = vlaneseq
        %v1072 = vshrl.u32 %v1071, 7
        %v1073 = vsub.s32 %v378, %v1072
        %v1074 = vrot.slane %v1035, %v1073
        %v1075 = vlaneseq
        %v1076 = vshrl.u32 %v1075, 7
        %v1077 = vsub.s32 %v383, %v1076
        %v1078 = vrot.slane %v1038, %v1077
        %v1079 = vsel %vm388, %v1078, %v1074
        %v1080 = vlaneseq
        %v1081 = vshrl.u32 %v1080, 7
        %v1082 = vsub.s32 %v378, %v1081
        %v1083 = vrot.slane %v1041, %v1082
        %v1084 = vlaneseq
        %v1085 = vshrl.u32 %v1084, 7
        %v1086 = vsub.s32 %v383, %v1085
        %v1087 = vrot.slane %v1044, %v1086
        %v1088 = vsel %vm388, %v1087, %v1083
        %v1089 = vsel %vm417, %v1070, %v1061
        %v1090 = vsel %vm419, %v1079, %v1089
        %v1091 = vsel %vm421, %v1088, %v1090
        %v1093 = vsel %vm424, %v1091, 0.0
        %1094 = vadd.xlane.f32.xlu0 %v1093
        %v1095 = vpop.xlane.xlu0 %1094
        %v1096 = vmul.f32 %v293, %v995
        %v1097 = vmul.f32 %v294, %v996
        %v1098 = vmul.f32 %v295, %v995
        %v1099 = vmul.f32 %v296, %v996
        %v1100 = vmul.f32 %v297, %v995
        %v1101 = vmul.f32 %v298, %v996
        %v1102 = vmul.f32 %v299, %v995
        %v1103 = vmul.f32 %v300, %v996
        %v1104 = vsel %vm212, %v1096, 0.0
        %1105 = vadd.xlane.f32.xlu0 %v1104
        %v1106 = vpop.xlane.xlu0 %1105
        %v1107 = vsel %vm212, %v1097, 0.0
        %1108 = vadd.xlane.f32.xlu0 %v1107
        %v1109 = vpop.xlane.xlu0 %1108
        %v1110 = vsel %vm212, %v1098, 0.0
        %1111 = vadd.xlane.f32.xlu0 %v1110
        %v1112 = vpop.xlane.xlu0 %1111
        %v1113 = vsel %vm212, %v1099, 0.0
        %1114 = vadd.xlane.f32.xlu0 %v1113
        %v1115 = vpop.xlane.xlu0 %1114
        %v1116 = vsel %vm212, %v1100, 0.0
        %1117 = vadd.xlane.f32.xlu0 %v1116
        %v1118 = vpop.xlane.xlu0 %1117
        %v1119 = vsel %vm212, %v1101, 0.0
        %1120 = vadd.xlane.f32.xlu0 %v1119
        %v1121 = vpop.xlane.xlu0 %1120
        %v1122 = vsel %vm212, %v1102, 0.0
        %1123 = vadd.xlane.f32.xlu0 %v1122
        %v1124 = vpop.xlane.xlu0 %1123
        %v1125 = vsel %vm212, %v1103, 0.0
        %1126 = vadd.xlane.f32.xlu0 %v1125
        %v1127 = vpop.xlane.xlu0 %1126
        %v1136 = vlaneseq
        %v1137 = vshrl.u32 %v1136, 7
        %v1138 = vsub.s32 %v378, %v1137
        %v1139 = vrot.slane %v1106, %v1138
        %v1140 = vlaneseq
        %v1141 = vshrl.u32 %v1140, 7
        %v1142 = vsub.s32 %v383, %v1141
        %v1143 = vrot.slane %v1109, %v1142
        %v1144 = vsel %vm388, %v1143, %v1139
        %v1145 = vlaneseq
        %v1146 = vshrl.u32 %v1145, 7
        %v1147 = vsub.s32 %v378, %v1146
        %v1148 = vrot.slane %v1112, %v1147
        %v1149 = vlaneseq
        %v1150 = vshrl.u32 %v1149, 7
        %v1151 = vsub.s32 %v383, %v1150
        %v1152 = vrot.slane %v1115, %v1151
        %v1153 = vsel %vm388, %v1152, %v1148
        %v1154 = vlaneseq
        %v1155 = vshrl.u32 %v1154, 7
        %v1156 = vsub.s32 %v378, %v1155
        %v1157 = vrot.slane %v1118, %v1156
        %v1158 = vlaneseq
        %v1159 = vshrl.u32 %v1158, 7
        %v1160 = vsub.s32 %v383, %v1159
        %v1161 = vrot.slane %v1121, %v1160
        %v1162 = vsel %vm388, %v1161, %v1157
        %v1163 = vlaneseq
        %v1164 = vshrl.u32 %v1163, 7
        %v1165 = vsub.s32 %v378, %v1164
        %v1166 = vrot.slane %v1124, %v1165
        %v1167 = vlaneseq
        %v1168 = vshrl.u32 %v1167, 7
        %v1169 = vsub.s32 %v383, %v1168
        %v1170 = vrot.slane %v1127, %v1169
        %v1171 = vsel %vm388, %v1170, %v1166
        %v1172 = vsel %vm417, %v1153, %v1144
        %v1173 = vsel %vm419, %v1162, %v1172
        %v1174 = vsel %vm421, %v1171, %v1173
        %v1176 = vsel %vm424, %v1174, 0.0
        %1177 = vadd.xlane.f32.xlu0 %v1176
        %v1178 = vpop.xlane.xlu0 %1177
        %v1179 = vadd.f32 %v1095, 1e-24
        %v1180 = vadd.f32 %v1178, 1e-24
        %v1181 = vrcp.pop %v1180
        %v1182 = vmul.f32 %v1179, %v1181
        %v1183 = vsub.f32 1.0, %v1182
        %v1185 = vlaneseq
        %v1186 = vshrl.u32 %v1185, 7
        %v1187 = vsub.s32 %v378, %v1186
        %v1188 = vrot.slane %v584, %v1187
        %v1191 = vlaneseq
        %v1192 = vshrl.u32 %v1191, 7
        %v1193 = vsub.s32 %v378, %v1192
        %v1194 = vrot.slane %v1183, %v1193
        %vm1196 = vcmask 1040384
        %v1197 = vsel %vm1196, %v1188, %v1194
        %vm1198 = vcmask 25600
        %1199 = vst.msk [vmem:[%s201] sm:$0x3] %vm1198, %v1197
        %s1200 = sand.u32 %s82, 1
        %s1201 = scalar_lea.sflag [#allocation4], %s1200
        %s1202 = sand.u32 %s82, 1
        %s1203 = smul.addr %s1202, 2
        %s1204 = scalar_lea.vmem [#allocation7], %s1203
        // Predicated region
        $region37: #{tpu_custom_call.1} parent=27 // pred_check
          %p1205 = pneg %p92
        $region38: #{tpu_custom_call.1} parent=27 // pred_check_branch
          %1207 = sbr.rel (%p1205) target = $region40
        $region39: #{tpu_custom_call.1} parent=27 // pred_region
          %s1209 = ssub.s32 32, 32
          %1210 = vsyncadd %s1201, %s1209
          %s1211 = smul.addr %s22, 32
          %s1212 = scalar_lea.hbm %s2, %s1211
          %s1214 = sshll.u32 %s1204, 4
          %s1215 = int_to_ptr.vmem [resolvable:$true] %s1214
          %1217 = dma.vmem_to_hbm [thread:$0]  %s1215, 32, %s1212, %s1201
        $region40: #{tpu_custom_call.1} parent=27 // pred_fallthru
          _
      $region28: #{tpu_custom_call.1} parent=5 // pred_fallthru
        _
      %p1218 = scmp.le.s32.totalorder 2, %s17
      // Predicated region
      $region41: #{tpu_custom_call.1} parent=5 // pred_check
        %p1219 = pneg %p1218
      $region42: #{tpu_custom_call.1} parent=5 // pred_check_branch
        %1221 = sbr.rel (%p1219) target = $region44
      $region43: #{tpu_custom_call.1} parent=5 // pred_region
        %s1222 = ssub.s32 %s17, 2
        // Predicated region
        $region45: #{tpu_custom_call.1} parent=43 // pred_check
          %p1223 = pneg %p98
        $region46: #{tpu_custom_call.1} parent=43 // pred_check_branch
          %1225 = sbr.rel (%p1223) target = $region48
        $region47: #{tpu_custom_call.1} parent=43 // pred_region
          %s1226 = sand.u32 %s83, 1
          %s1227 = scalar_lea.sflag [#allocation4], %s1226
          %s1228 = sand.u32 %s83, 1
          %s1229 = smul.addr %s1228, 2
          %s1230 = scalar_lea.vmem [#allocation7], %s1229
          %1231 = dma.done %s1227, 32
        $region48: #{tpu_custom_call.1} parent=43 // pred_fallthru
          _
      $region44: #{tpu_custom_call.1} parent=5 // pred_fallthru
        _
    $region6: #{tpu_custom_call.1} parent=1 // loop_footer
      %s21 = sadd.s32 1, %s17
    $region7: #{tpu_custom_call.1} parent=1 // loop_footer_branch
      %16 = sbr.rel target = $region3
    $region8: #{tpu_custom_call.1} parent=1 // loop_exit
      _
    %1232 = vsyncpa [#allocation3], 1
    %s1233 = scalar_lea.sflag [#allocation3], 1
    %1234 = vsyncpa %s1233, 1
    %1235 = vsyncpa [#allocation6], 1
    %s1236 = scalar_lea.sflag [#allocation6], 1
    %1237 = vsyncpa %s1236, 1
    %1238 = vsyncpa [#allocation4], 1
    %s1239 = scalar_lea.sflag [#allocation4], 1
    %1240 = vsyncpa %s1239, 1

</llo_original>
